<compile_context>
chip_gen: v7x
topology: tpu7x:2x2x1
jax: 0.10.0
libtpu: 0.0.40
codegen_flags: <defaults>
</compile_context>

<pallas_src>
import math

import jax
import jax.numpy as jnp
import numpy as np
from jax import lax
from jax.experimental import pallas as pl
from jax.experimental.pallas import tpu as pltpu  # noqa: F401  (kept for TPU-specific extensions)

# ---------------- model dims (small, synthetic) ----------------
B = 2        # batch
S = 8        # sequence length
D = 32       # d_model (== `size`)
H = 4        # attention heads
DK = D // H  # per-head dim
F = 64       # feed-forward hidden dim
EPS = 1e-6
SCALE = 1.0 / math.sqrt(DK)


def encoder_layer_kernel(
    x_ref, mask_ref,
    ln1a_ref, ln1b_ref,
    wqkv_ref, bqkv_ref, wo_ref, bo_ref,
    ln2a_ref, ln2b_ref,
    w1_ref, b1_ref, w2_ref, b2_ref,
    out_ref,
):
    x = x_ref[...]  # (B*S, D) -- batch folded into the row (sublane) axis

    def layer_norm(h, a, b):
        mean = jnp.mean(h, axis=-1, keepdims=True)
        diff = h - mean
        # unbiased variance (torch .std default), eps added to std (Annotated Transformer),
        # so lax.rsqrt is not applicable.  approx=False keeps the value exact; approx=True
        # (EUP vrcp) is a follow-up pending an on-hardware check against the 1e-4 tolerance.
        var = jnp.sum(diff * diff, axis=-1, keepdims=True) * (1.0 / (D - 1))
        inv = pl.reciprocal(jnp.sqrt(var) + EPS, approx=False)
        return a * (diff * inv) + b

    # ---------------- sublayer 0: self-attention (pre-norm residual) ----------------
    h = layer_norm(x, ln1a_ref[...], ln1b_ref[...])
    # fused Q|K|V projection: one MXU matmul + one bias add instead of three
    qkv = jnp.dot(h, wqkv_ref[...], preferred_element_type=jnp.float32) + bqkv_ref[...]  # (B*S, 3D)

    # Additive mask bias: pure arithmetic (no compare/select), computed once for all batches.
    # mask == 1 -> 0,  mask == 0 -> -1e9   (shape (B, S), per-key, broadcast over queries)
    bias = (mask_ref[...] - 1.0) * 1e9
    bias_slab = jnp.concatenate(
        [jnp.broadcast_to(bias[b:b + 1, :], (H * S, S)) for b in range(B)], axis=0
    )  # (B*H*S, S)

    # Per-(batch, head) score blocks.  lax.dot_general contracts dim 1 of both operands,
    # absorbing the k transpose into the MXU operand load (no XLU vxpose per head).
    dn = (((1,), (1,)), ((), ()))
    score_blocks = []
    for b in range(B):                                 # static unroll, B = 2
        qkv_b = qkv[b * S:(b + 1) * S, :]              # (S, 3D) sublane slice
        for hh in range(H):                            # static unroll over heads
            c = hh * DK
            # NOTE: 8-wide per-head lane slices cost lane relayouts; a heads-on-sublane
            # layout needs an extra transpose that doesn't pay off at S = DK = 8.
            qh = qkv_b[:, c:c + DK]                    # (S, DK)
            kh = qkv_b[:, D + c:D + c + DK]            # (S, DK)
            score_blocks.append(
                lax.dot_general(qh, kh, dimension_numbers=dn,
                                preferred_element_type=jnp.float32))          # (S, S)

    # Batched softmax over one (B*H*S, S) slab: single exp / sum-reduce / reciprocal.
    # No max-subtraction: unmasked scores are O(1), masked scores ~-1e9 underflow exp to 0.
    scores = jnp.concatenate(score_blocks, axis=0) * SCALE + bias_slab        # (B*H*S, S)
    e = jnp.exp(scores)
    # TODO(synk): switch to pl.reciprocal(..., approx=True) once the 1e-4 tolerance is
    # verified on hardware with the approximate EUP vrcp path.
    p = e * pl.reciprocal(jnp.sum(e, axis=-1, keepdims=True), approx=False)   # (B*H*S, S)

    # Per-head context; heads lane-concatenated so the output projection is ONE matmul.
    ctx_rows = []
    for b in range(B):
        qkv_b = qkv[b * S:(b + 1) * S, :]
        head_ctx = []
        for hh in range(H):
            c = hh * DK
            blk = (b * H + hh) * S
            vh = qkv_b[:, 2 * D + c:2 * D + c + DK]    # (S, DK)
            head_ctx.append(jnp.dot(p[blk:blk + S, :], vh,
                                    preferred_element_type=jnp.float32))      # (S, DK)
        ctx_rows.append(jnp.concatenate(head_ctx, axis=1))                    # (S, D) lane concat
    ctx = jnp.concatenate(ctx_rows, axis=0)                                   # (B*S, D) sublane stack
    attn = jnp.dot(ctx, wo_ref[...], preferred_element_type=jnp.float32) + bo_ref[...]
    x1 = x + attn                                      # residual (dropout = identity in eval)

    # ---------------- sublayer 1: position-wise feed forward ----------------
    h2 = layer_norm(x1, ln2a_ref[...], ln2b_ref[...])
    ff = jnp.dot(h2, w1_ref[...], preferred_element_type=jnp.float32) + b1_ref[...]
    ff = jnp.maximum(ff, 0.0)
    ff = jnp.dot(ff, w2_ref[...], preferred_element_type=jnp.float32) + b2_ref[...]

    out_ref[...] = x1 + ff                             # residual (dropout = identity in eval)


def encoder_layer(x, mask, params):
    (ln1a, ln1b, wq, bq, wk, bk, wv, bv, wo, bo, ln2a, ln2b, w1, b1, w2, b2) = params

    # Host-side, one-time layout plumbing (free): fuse QKV weights, fold batch into rows,
    # squeeze the mask's singleton query dim.
    wqkv = jnp.concatenate([wq, wk, wv], axis=1)   # (D, 3D)
    bqkv = jnp.concatenate([bq, bk, bv], axis=1)   # (1, 3D)
    x2 = x.reshape(B * S, D)
    mask2 = mask.reshape(B, S)

    out = pl.pallas_call(
        encoder_layer_kernel,
        out_shape=jax.ShapeDtypeStruct((B * S, D), jnp.float32),
        # grid=(): single kernel step; every operand (<100 KiB total) lives fully in VMEM,
        # so no per-step overhead and no repeated weight DMAs.  Add a parallel batch grid
        # axis (dimension_semantics=("parallel",)) only if B/S grow (v7x has 2 TCs).
    )(x2, mask2, ln1a, ln1b, wqkv, bqkv, wo, bo, ln2a, ln2b, w1, b1, w2, b2)

    return out.reshape(B, S, D)


# ---------------- pure-JAX reference (same math as the PyTorch module) ----------------
def reference(x, mask, params):
    (ln1a, ln1b, wq, bq, wk, bk, wv, bv, wo, bo, ln2a, ln2b, w1, b1, w2, b2) = params

    def layer_norm(h, a, b):
        mean = jnp.mean(h, axis=-1, keepdims=True)
        diff = h - mean
        var = jnp.sum(diff * diff, axis=-1, keepdims=True) / (D - 1)
        return a * diff / (jnp.sqrt(var) + EPS) + b

    h = layer_norm(x, ln1a, ln1b)
    q = h @ wq + bq
    k = h @ wk + bk
    v = h @ wv + bv
    qh = q.reshape(B, S, H, DK).transpose(0, 2, 1, 3)
    kh = k.reshape(B, S, H, DK).transpose(0, 2, 1, 3)
    vh = v.reshape(B, S, H, DK).transpose(0, 2, 1, 3)
    scores = jnp.einsum("bhqd,bhkd->bhqk", qh, kh) * SCALE
    scores = jnp.where(mask[:, None, :, :] == 0.0, -1e9, scores)
    p = jax.nn.softmax(scores, axis=-1)
    attn = jnp.einsum("bhqk,bhkd->bhqd", p, vh).transpose(0, 2, 1, 3).reshape(B, S, D)
    x1 = x + (attn @ wo + bo)
    h2 = layer_norm(x1, ln2a, ln2b)
    ff = jnp.maximum(h2 @ w1 + b1, 0.0) @ w2 + b2
    return x1 + ff


if __name__ == "__main__":
    key = jax.random.PRNGKey(0)
    keys = jax.random.split(key, 12)

    x = jax.random.normal(keys[0], (B, S, D), jnp.float32)
    # mask: last two key positions of batch 1 are padding
    mask_np = np.ones((B, 1, S), np.float32)
    mask_np[1, 0, S - 2:] = 0.0
    mask = jnp.asarray(mask_np)

    def lin(k, fan_in, fan_out):
        bound = 1.0 / math.sqrt(fan_in)
        kw, kb = jax.random.split(k)
        w = jax.random.uniform(kw, (fan_in, fan_out), jnp.float32, -bound, bound)
        b = jax.random.uniform(kb, (1, fan_out), jnp.float32, -bound, bound)
        return w, b

    ln1a = jnp.ones((1, D), jnp.float32)
    ln1b = jnp.zeros((1, D), jnp.float32)
    ln2a = jnp.ones((1, D), jnp.float32)
    ln2b = jnp.zeros((1, D), jnp.float32)
    wq, bq = lin(keys[1], D, D)
    wk, bk = lin(keys[2], D, D)
    wv, bv = lin(keys[3], D, D)
    wo, bo = lin(keys[4], D, D)
    w1, b1 = lin(keys[5], D, F)
    w2, b2 = lin(keys[6], F, D)

    params = (ln1a, ln1b, wq, bq, wk, bk, wv, bv, wo, bo, ln2a, ln2b, w1, b1, w2, b2)

    out = encoder_layer(x, mask, params)
    out = jax.block_until_ready(out)

    ref = jax.block_until_ready(reference(x, mask, params))
    np.testing.assert_allclose(np.asarray(out), np.asarray(ref), rtol=1e-4, atol=1e-4)

    print("KERNEL_OK")
</pallas_src>

<mosaic_0001>
module attributes {stable_mosaic.version = 11 : i64} {
  func.func @encoder_layer_kernel(%arg0: memref<16x32xf32, #tpu.memory_space<vmem>>, %arg1: memref<2x8xf32, #tpu.memory_space<vmem>>, %arg2: memref<1x32xf32, #tpu.memory_space<vmem>>, %arg3: memref<1x32xf32, #tpu.memory_space<vmem>>, %arg4: memref<32x96xf32, #tpu.memory_space<vmem>>, %arg5: memref<1x96xf32, #tpu.memory_space<vmem>>, %arg6: memref<32x32xf32, #tpu.memory_space<vmem>>, %arg7: memref<1x32xf32, #tpu.memory_space<vmem>>, %arg8: memref<1x32xf32, #tpu.memory_space<vmem>>, %arg9: memref<1x32xf32, #tpu.memory_space<vmem>>, %arg10: memref<32x64xf32, #tpu.memory_space<vmem>>, %arg11: memref<1x64xf32, #tpu.memory_space<vmem>>, %arg12: memref<64x32xf32, #tpu.memory_space<vmem>>, %arg13: memref<1x32xf32, #tpu.memory_space<vmem>>, %arg14: memref<16x32xf32, #tpu.memory_space<vmem>>) attributes {dimension_semantics = [], scalar_prefetch = 0 : i64, scratch_operands = 0 : i64, tpu.core_type = #tpu.core_type<tc>} {
    %c0 = arith.constant 0 : index
    %c0_0 = arith.constant 0 : index
    %0 = vector.load %arg0[%c0, %c0_0] : memref<16x32xf32, #tpu.memory_space<vmem>>, vector<16x32xf32>
    %c0_1 = arith.constant 0 : index
    %c0_2 = arith.constant 0 : index
    %1 = vector.load %arg2[%c0_1, %c0_2] : memref<1x32xf32, #tpu.memory_space<vmem>>, vector<1x32xf32>
    %c0_3 = arith.constant 0 : index
    %c0_4 = arith.constant 0 : index
    %2 = vector.load %arg3[%c0_3, %c0_4] : memref<1x32xf32, #tpu.memory_space<vmem>>, vector<1x32xf32>
    %cst = arith.constant dense<0.000000e+00> : vector<16xf32>
    %3 = vector.multi_reduction <add>, %0, %cst [1] : vector<16x32xf32> to vector<16xf32>
    %4 = vector.shape_cast %3 : vector<16xf32> to vector<16x1xf32>
    %cst_5 = arith.constant 3.200000e+01 : f32
    %5 = vector.broadcast %cst_5 : f32 to vector<16x1xf32>
    %6 = arith.divf %4, %5 : vector<16x1xf32>
    %7 = vector.broadcast %6 : vector<16x1xf32> to vector<16x32xf32>
    %8 = arith.subf %0, %7 : vector<16x32xf32>
    %9 = arith.mulf %8, %8 : vector<16x32xf32>
    %cst_6 = arith.constant dense<0.000000e+00> : vector<16xf32>
    %10 = vector.multi_reduction <add>, %9, %cst_6 [1] : vector<16x32xf32> to vector<16xf32>
    %11 = vector.shape_cast %10 : vector<16xf32> to vector<16x1xf32>
    %cst_7 = arith.constant 0.0322580636 : f32
    %12 = vector.broadcast %cst_7 : f32 to vector<16x1xf32>
    %13 = arith.mulf %11, %12 : vector<16x1xf32>
    %14 = math.sqrt %13 : vector<16x1xf32>
    %cst_8 = arith.constant 9.99999997E-7 : f32
    %15 = vector.broadcast %cst_8 : f32 to vector<16x1xf32>
    %16 = arith.addf %14, %15 : vector<16x1xf32>
    %17 = tpu.reciprocal %16 : vector<16x1xf32> -> vector<16x1xf32>
    %18 = vector.broadcast %17 : vector<16x1xf32> to vector<16x32xf32>
    %19 = arith.mulf %8, %18 : vector<16x32xf32>
    %20 = vector.broadcast %1 : vector<1x32xf32> to vector<16x32xf32>
    %21 = arith.mulf %20, %19 : vector<16x32xf32>
    %22 = vector.broadcast %2 : vector<1x32xf32> to vector<16x32xf32>
    %23 = arith.addf %21, %22 : vector<16x32xf32>
    %c0_9 = arith.constant 0 : index
    %c0_10 = arith.constant 0 : index
    %24 = vector.load %arg4[%c0_9, %c0_10] : memref<32x96xf32, #tpu.memory_space<vmem>>, vector<32x96xf32>
    %cst_11 = arith.constant dense<0.000000e+00> : vector<16x96xf32>
    %25 = tpu.matmul %23, %24, %cst_11 {dimension_numbers = #tpu.dot_dimension_numbers<[1], [0], [0], [1], [0, 0, 1, 1], [], []>} : vector<16x32xf32>, vector<32x96xf32>, vector<16x96xf32> -> vector<16x96xf32>
    %c0_12 = arith.constant 0 : index
    %c0_13 = arith.constant 0 : index
    %26 = vector.load %arg5[%c0_12, %c0_13] : memref<1x96xf32, #tpu.memory_space<vmem>>, vector<1x96xf32>
    %27 = vector.broadcast %26 : vector<1x96xf32> to vector<16x96xf32>
    %28 = arith.addf %25, %27 : vector<16x96xf32>
    %c0_14 = arith.constant 0 : index
    %c0_15 = arith.constant 0 : index
    %29 = vector.load %arg1[%c0_14, %c0_15] : memref<2x8xf32, #tpu.memory_space<vmem>>, vector<2x8xf32>
    %cst_16 = arith.constant 1.000000e+00 : f32
    %30 = vector.broadcast %cst_16 : f32 to vector<2x8xf32>
    %31 = arith.subf %29, %30 : vector<2x8xf32>
    %cst_17 = arith.constant 1.000000e+09 : f32
    %32 = vector.broadcast %cst_17 : f32 to vector<2x8xf32>
    %33 = arith.mulf %31, %32 : vector<2x8xf32>
    %34 = vector.extract_strided_slice %33 {offsets = [0, 0], sizes = [1, 8], strides = [1, 1]} : vector<2x8xf32> to vector<1x8xf32>
    %35 = vector.shape_cast %34 : vector<1x8xf32> to vector<1x8xf32>
    %36 = vector.broadcast %35 : vector<1x8xf32> to vector<32x8xf32>
    %37 = vector.extract_strided_slice %33 {offsets = [1, 0], sizes = [1, 8], strides = [1, 1]} : vector<2x8xf32> to vector<1x8xf32>
    %38 = vector.shape_cast %37 : vector<1x8xf32> to vector<1x8xf32>
    %39 = vector.broadcast %38 : vector<1x8xf32> to vector<32x8xf32>
    %40 = tpu.concatenate %36, %39 in 0 : vector<32x8xf32>, vector<32x8xf32> -> vector<64x8xf32>
    %41 = vector.extract_strided_slice %28 {offsets = [0, 0], sizes = [8, 96], strides = [1, 1]} : vector<16x96xf32> to vector<8x96xf32>
    %42 = vector.extract_strided_slice %41 {offsets = [0, 0], sizes = [8, 8], strides = [1, 1]} : vector<8x96xf32> to vector<8x8xf32>
    %43 = vector.extract_strided_slice %41 {offsets = [0, 32], sizes = [8, 8], strides = [1, 1]} : vector<8x96xf32> to vector<8x8xf32>
    %cst_18 = arith.constant dense<0.000000e+00> : vector<8x8xf32>
    %44 = tpu.matmul %42, %43, %cst_18 {dimension_numbers = #tpu.dot_dimension_numbers<[1], [1], [0], [0], [0, 0, 1, 0], [], []>} : vector<8x8xf32>, vector<8x8xf32>, vector<8x8xf32> -> vector<8x8xf32>
    %45 = vector.extract_strided_slice %41 {offsets = [0, 8], sizes = [8, 8], strides = [1, 1]} : vector<8x96xf32> to vector<8x8xf32>
    %46 = vector.extract_strided_slice %41 {offsets = [0, 40], sizes = [8, 8], strides = [1, 1]} : vector<8x96xf32> to vector<8x8xf32>
    %cst_19 = arith.constant dense<0.000000e+00> : vector<8x8xf32>
    %47 = tpu.matmul %45, %46, %cst_19 {dimension_numbers = #tpu.dot_dimension_numbers<[1], [1], [0], [0], [0, 0, 1, 0], [], []>} : vector<8x8xf32>, vector<8x8xf32>, vector<8x8xf32> -> vector<8x8xf32>
    %48 = vector.extract_strided_slice %41 {offsets = [0, 16], sizes = [8, 8], strides = [1, 1]} : vector<8x96xf32> to vector<8x8xf32>
    %49 = vector.extract_strided_slice %41 {offsets = [0, 48], sizes = [8, 8], strides = [1, 1]} : vector<8x96xf32> to vector<8x8xf32>
    %cst_20 = arith.constant dense<0.000000e+00> : vector<8x8xf32>
    %50 = tpu.matmul %48, %49, %cst_20 {dimension_numbers = #tpu.dot_dimension_numbers<[1], [1], [0], [0], [0, 0, 1, 0], [], []>} : vector<8x8xf32>, vector<8x8xf32>, vector<8x8xf32> -> vector<8x8xf32>
    %51 = vector.extract_strided_slice %41 {offsets = [0, 24], sizes = [8, 8], strides = [1, 1]} : vector<8x96xf32> to vector<8x8xf32>
    %52 = vector.extract_strided_slice %41 {offsets = [0, 56], sizes = [8, 8], strides = [1, 1]} : vector<8x96xf32> to vector<8x8xf32>
    %cst_21 = arith.constant dense<0.000000e+00> : vector<8x8xf32>
    %53 = tpu.matmul %51, %52, %cst_21 {dimension_numbers = #tpu.dot_dimension_numbers<[1], [1], [0], [0], [0, 0, 1, 0], [], []>} : vector<8x8xf32>, vector<8x8xf32>, vector<8x8xf32> -> vector<8x8xf32>
    %54 = vector.extract_strided_slice %28 {offsets = [8, 0], sizes = [8, 96], strides = [1, 1]} : vector<16x96xf32> to vector<8x96xf32>
    %55 = vector.extract_strided_slice %54 {offsets = [0, 0], sizes = [8, 8], strides = [1, 1]} : vector<8x96xf32> to vector<8x8xf32>
    %56 = vector.extract_strided_slice %54 {offsets = [0, 32], sizes = [8, 8], strides = [1, 1]} : vector<8x96xf32> to vector<8x8xf32>
    %cst_22 = arith.constant dense<0.000000e+00> : vector<8x8xf32>
    %57 = tpu.matmul %55, %56, %cst_22 {dimension_numbers = #tpu.dot_dimension_numbers<[1], [1], [0], [0], [0, 0, 1, 0], [], []>} : vector<8x8xf32>, vector<8x8xf32>, vector<8x8xf32> -> vector<8x8xf32>
    %58 = vector.extract_strided_slice %54 {offsets = [0, 8], sizes = [8, 8], strides = [1, 1]} : vector<8x96xf32> to vector<8x8xf32>
    %59 = vector.extract_strided_slice %54 {offsets = [0, 40], sizes = [8, 8], strides = [1, 1]} : vector<8x96xf32> to vector<8x8xf32>
    %cst_23 = arith.constant dense<0.000000e+00> : vector<8x8xf32>
    %60 = tpu.matmul %58, %59, %cst_23 {dimension_numbers = #tpu.dot_dimension_numbers<[1], [1], [0], [0], [0, 0, 1, 0], [], []>} : vector<8x8xf32>, vector<8x8xf32>, vector<8x8xf32> -> vector<8x8xf32>
    %61 = vector.extract_strided_slice %54 {offsets = [0, 16], sizes = [8, 8], strides = [1, 1]} : vector<8x96xf32> to vector<8x8xf32>
    %62 = vector.extract_strided_slice %54 {offsets = [0, 48], sizes = [8, 8], strides = [1, 1]} : vector<8x96xf32> to vector<8x8xf32>
    %cst_24 = arith.constant dense<0.000000e+00> : vector<8x8xf32>
    %63 = tpu.matmul %61, %62, %cst_24 {dimension_numbers = #tpu.dot_dimension_numbers<[1], [1], [0], [0], [0, 0, 1, 0], [], []>} : vector<8x8xf32>, vector<8x8xf32>, vector<8x8xf32> -> vector<8x8xf32>
    %64 = vector.extract_strided_slice %54 {offsets = [0, 24], sizes = [8, 8], strides = [1, 1]} : vector<8x96xf32> to vector<8x8xf32>
    %65 = vector.extract_strided_slice %54 {offsets = [0, 56], sizes = [8, 8], strides = [1, 1]} : vector<8x96xf32> to vector<8x8xf32>
    %cst_25 = arith.constant dense<0.000000e+00> : vector<8x8xf32>
    %66 = tpu.matmul %64, %65, %cst_25 {dimension_numbers = #tpu.dot_dimension_numbers<[1], [1], [0], [0], [0, 0, 1, 0], [], []>} : vector<8x8xf32>, vector<8x8xf32>, vector<8x8xf32> -> vector<8x8xf32>
    %67 = tpu.concatenate %44, %47, %50, %53, %57, %60, %63, %66 in 0 : vector<8x8xf32>, vector<8x8xf32>, vector<8x8xf32>, vector<8x8xf32>, vector<8x8xf32>, vector<8x8xf32>, vector<8x8xf32>, vector<8x8xf32> -> vector<64x8xf32>
    %cst_26 = arith.constant 0.353553385 : f32
    %68 = vector.broadcast %cst_26 : f32 to vector<64x8xf32>
    %69 = arith.mulf %67, %68 : vector<64x8xf32>
    %70 = arith.addf %69, %40 : vector<64x8xf32>
    %71 = math.exp %70 : vector<64x8xf32>
    %cst_27 = arith.constant dense<0.000000e+00> : vector<64xf32>
    %72 = vector.multi_reduction <add>, %71, %cst_27 [1] : vector<64x8xf32> to vector<64xf32>
    %73 = vector.shape_cast %72 : vector<64xf32> to vector<64x1xf32>
    %74 = tpu.reciprocal %73 : vector<64x1xf32> -> vector<64x1xf32>
    %75 = vector.broadcast %74 : vector<64x1xf32> to vector<64x8xf32>
    %76 = arith.mulf %71, %75 : vector<64x8xf32>
    %77 = vector.extract_strided_slice %28 {offsets = [0, 0], sizes = [8, 96], strides = [1, 1]} : vector<16x96xf32> to vector<8x96xf32>
    %78 = vector.extract_strided_slice %77 {offsets = [0, 64], sizes = [8, 8], strides = [1, 1]} : vector<8x96xf32> to vector<8x8xf32>
    %79 = vector.extract_strided_slice %76 {offsets = [0, 0], sizes = [8, 8], strides = [1, 1]} : vector<64x8xf32> to vector<8x8xf32>
    %cst_28 = arith.constant dense<0.000000e+00> : vector<8x8xf32>
    %80 = tpu.matmul %79, %78, %cst_28 {dimension_numbers = #tpu.dot_dimension_numbers<[1], [0], [0], [1], [0, 0, 1, 1], [], []>} : vector<8x8xf32>, vector<8x8xf32>, vector<8x8xf32> -> vector<8x8xf32>
    %81 = vector.extract_strided_slice %77 {offsets = [0, 72], sizes = [8, 8], strides = [1, 1]} : vector<8x96xf32> to vector<8x8xf32>
    %82 = vector.extract_strided_slice %76 {offsets = [8, 0], sizes = [8, 8], strides = [1, 1]} : vector<64x8xf32> to vector<8x8xf32>
    %cst_29 = arith.constant dense<0.000000e+00> : vector<8x8xf32>
    %83 = tpu.matmul %82, %81, %cst_29 {dimension_numbers = #tpu.dot_dimension_numbers<[1], [0], [0], [1], [0, 0, 1, 1], [], []>} : vector<8x8xf32>, vector<8x8xf32>, vector<8x8xf32> -> vector<8x8xf32>
    %84 = vector.extract_strided_slice %77 {offsets = [0, 80], sizes = [8, 8], strides = [1, 1]} : vector<8x96xf32> to vector<8x8xf32>
    %85 = vector.extract_strided_slice %76 {offsets = [16, 0], sizes = [8, 8], strides = [1, 1]} : vector<64x8xf32> to vector<8x8xf32>
    %cst_30 = arith.constant dense<0.000000e+00> : vector<8x8xf32>
    %86 = tpu.matmul %85, %84, %cst_30 {dimension_numbers = #tpu.dot_dimension_numbers<[1], [0], [0], [1], [0, 0, 1, 1], [], []>} : vector<8x8xf32>, vector<8x8xf32>, vector<8x8xf32> -> vector<8x8xf32>
    %87 = vector.extract_strided_slice %77 {offsets = [0, 88], sizes = [8, 8], strides = [1, 1]} : vector<8x96xf32> to vector<8x8xf32>
    %88 = vector.extract_strided_slice %76 {offsets = [24, 0], sizes = [8, 8], strides = [1, 1]} : vector<64x8xf32> to vector<8x8xf32>
    %cst_31 = arith.constant dense<0.000000e+00> : vector<8x8xf32>
    %89 = tpu.matmul %88, %87, %cst_31 {dimension_numbers = #tpu.dot_dimension_numbers<[1], [0], [0], [1], [0, 0, 1, 1], [], []>} : vector<8x8xf32>, vector<8x8xf32>, vector<8x8xf32> -> vector<8x8xf32>
    %90 = tpu.concatenate %80, %83, %86, %89 in 1 : vector<8x8xf32>, vector<8x8xf32>, vector<8x8xf32>, vector<8x8xf32> -> vector<8x32xf32>
    %91 = vector.extract_strided_slice %28 {offsets = [8, 0], sizes = [8, 96], strides = [1, 1]} : vector<16x96xf32> to vector<8x96xf32>
    %92 = vector.extract_strided_slice %91 {offsets = [0, 64], sizes = [8, 8], strides = [1, 1]} : vector<8x96xf32> to vector<8x8xf32>
    %93 = vector.extract_strided_slice %76 {offsets = [32, 0], sizes = [8, 8], strides = [1, 1]} : vector<64x8xf32> to vector<8x8xf32>
    %cst_32 = arith.constant dense<0.000000e+00> : vector<8x8xf32>
    %94 = tpu.matmul %93, %92, %cst_32 {dimension_numbers = #tpu.dot_dimension_numbers<[1], [0], [0], [1], [0, 0, 1, 1], [], []>} : vector<8x8xf32>, vector<8x8xf32>, vector<8x8xf32> -> vector<8x8xf32>
    %95 = vector.extract_strided_slice %91 {offsets = [0, 72], sizes = [8, 8], strides = [1, 1]} : vector<8x96xf32> to vector<8x8xf32>
    %96 = vector.extract_strided_slice %76 {offsets = [40, 0], sizes = [8, 8], strides = [1, 1]} : vector<64x8xf32> to vector<8x8xf32>
    %cst_33 = arith.constant dense<0.000000e+00> : vector<8x8xf32>
    %97 = tpu.matmul %96, %95, %cst_33 {dimension_numbers = #tpu.dot_dimension_numbers<[1], [0], [0], [1], [0, 0, 1, 1], [], []>} : vector<8x8xf32>, vector<8x8xf32>, vector<8x8xf32> -> vector<8x8xf32>
    %98 = vector.extract_strided_slice %91 {offsets = [0, 80], sizes = [8, 8], strides = [1, 1]} : vector<8x96xf32> to vector<8x8xf32>
    %99 = vector.extract_strided_slice %76 {offsets = [48, 0], sizes = [8, 8], strides = [1, 1]} : vector<64x8xf32> to vector<8x8xf32>
    %cst_34 = arith.constant dense<0.000000e+00> : vector<8x8xf32>
    %100 = tpu.matmul %99, %98, %cst_34 {dimension_numbers = #tpu.dot_dimension_numbers<[1], [0], [0], [1], [0, 0, 1, 1], [], []>} : vector<8x8xf32>, vector<8x8xf32>, vector<8x8xf32> -> vector<8x8xf32>
    %101 = vector.extract_strided_slice %91 {offsets = [0, 88], sizes = [8, 8], strides = [1, 1]} : vector<8x96xf32> to vector<8x8xf32>
    %102 = vector.extract_strided_slice %76 {offsets = [56, 0], sizes = [8, 8], strides = [1, 1]} : vector<64x8xf32> to vector<8x8xf32>
    %cst_35 = arith.constant dense<0.000000e+00> : vector<8x8xf32>
    %103 = tpu.matmul %102, %101, %cst_35 {dimension_numbers = #tpu.dot_dimension_numbers<[1], [0], [0], [1], [0, 0, 1, 1], [], []>} : vector<8x8xf32>, vector<8x8xf32>, vector<8x8xf32> -> vector<8x8xf32>
    %104 = tpu.concatenate %94, %97, %100, %103 in 1 : vector<8x8xf32>, vector<8x8xf32>, vector<8x8xf32>, vector<8x8xf32> -> vector<8x32xf32>
    %105 = tpu.concatenate %90, %104 in 0 : vector<8x32xf32>, vector<8x32xf32> -> vector<16x32xf32>
    %c0_36 = arith.constant 0 : index
    %c0_37 = arith.constant 0 : index
    %106 = vector.load %arg6[%c0_36, %c0_37] : memref<32x32xf32, #tpu.memory_space<vmem>>, vector<32x32xf32>
    %cst_38 = arith.constant dense<0.000000e+00> : vector<16x32xf32>
    %107 = tpu.matmul %105, %106, %cst_38 {dimension_numbers = #tpu.dot_dimension_numbers<[1], [0], [0], [1], [0, 0, 1, 1], [], []>} : vector<16x32xf32>, vector<32x32xf32>, vector<16x32xf32> -> vector<16x32xf32>
    %c0_39 = arith.constant 0 : index
    %c0_40 = arith.constant 0 : index
    %108 = vector.load %arg7[%c0_39, %c0_40] : memref<1x32xf32, #tpu.memory_space<vmem>>, vector<1x32xf32>
    %109 = vector.broadcast %108 : vector<1x32xf32> to vector<16x32xf32>
    %110 = arith.addf %107, %109 : vector<16x32xf32>
    %111 = arith.addf %0, %110 : vector<16x32xf32>
    %c0_41 = arith.constant 0 : index
    %c0_42 = arith.constant 0 : index
    %112 = vector.load %arg8[%c0_41, %c0_42] : memref<1x32xf32, #tpu.memory_space<vmem>>, vector<1x32xf32>
    %c0_43 = arith.constant 0 : index
    %c0_44 = arith.constant 0 : index
    %113 = vector.load %arg9[%c0_43, %c0_44] : memref<1x32xf32, #tpu.memory_space<vmem>>, vector<1x32xf32>
    %cst_45 = arith.constant dense<0.000000e+00> : vector<16xf32>
    %114 = vector.multi_reduction <add>, %111, %cst_45 [1] : vector<16x32xf32> to vector<16xf32>
    %115 = vector.shape_cast %114 : vector<16xf32> to vector<16x1xf32>
    %cst_46 = arith.constant 3.200000e+01 : f32
    %116 = vector.broadcast %cst_46 : f32 to vector<16x1xf32>
    %117 = arith.divf %115, %116 : vector<16x1xf32>
    %118 = vector.broadcast %117 : vector<16x1xf32> to vector<16x32xf32>
    %119 = arith.subf %111, %118 : vector<16x32xf32>
    %120 = arith.mulf %119, %119 : vector<16x32xf32>
    %cst_47 = arith.constant dense<0.000000e+00> : vector<16xf32>
    %121 = vector.multi_reduction <add>, %120, %cst_47 [1] : vector<16x32xf32> to vector<16xf32>
    %122 = vector.shape_cast %121 : vector<16xf32> to vector<16x1xf32>
    %cst_48 = arith.constant 0.0322580636 : f32
    %123 = vector.broadcast %cst_48 : f32 to vector<16x1xf32>
    %124 = arith.mulf %122, %123 : vector<16x1xf32>
    %125 = math.sqrt %124 : vector<16x1xf32>
    %cst_49 = arith.constant 9.99999997E-7 : f32
    %126 = vector.broadcast %cst_49 : f32 to vector<16x1xf32>
    %127 = arith.addf %125, %126 : vector<16x1xf32>
    %128 = tpu.reciprocal %127 : vector<16x1xf32> -> vector<16x1xf32>
    %129 = vector.broadcast %128 : vector<16x1xf32> to vector<16x32xf32>
    %130 = arith.mulf %119, %129 : vector<16x32xf32>
    %131 = vector.broadcast %112 : vector<1x32xf32> to vector<16x32xf32>
    %132 = arith.mulf %131, %130 : vector<16x32xf32>
    %133 = vector.broadcast %113 : vector<1x32xf32> to vector<16x32xf32>
    %134 = arith.addf %132, %133 : vector<16x32xf32>
    %c0_50 = arith.constant 0 : index
    %c0_51 = arith.constant 0 : index
    %135 = vector.load %arg10[%c0_50, %c0_51] : memref<32x64xf32, #tpu.memory_space<vmem>>, vector<32x64xf32>
    %cst_52 = arith.constant dense<0.000000e+00> : vector<16x64xf32>
    %136 = tpu.matmul %134, %135, %cst_52 {dimension_numbers = #tpu.dot_dimension_numbers<[1], [0], [0], [1], [0, 0, 1, 1], [], []>} : vector<16x32xf32>, vector<32x64xf32>, vector<16x64xf32> -> vector<16x64xf32>
    %c0_53 = arith.constant 0 : index
    %c0_54 = arith.constant 0 : index
    %137 = vector.load %arg11[%c0_53, %c0_54] : memref<1x64xf32, #tpu.memory_space<vmem>>, vector<1x64xf32>
    %138 = vector.broadcast %137 : vector<1x64xf32> to vector<16x64xf32>
    %139 = arith.addf %136, %138 : vector<16x64xf32>
    %cst_55 = arith.constant 0.000000e+00 : f32
    %140 = vector.broadcast %cst_55 : f32 to vector<16x64xf32>
    %141 = arith.maximumf %139, %140 : vector<16x64xf32>
    %c0_56 = arith.constant 0 : index
    %c0_57 = arith.constant 0 : index
    %142 = vector.load %arg12[%c0_56, %c0_57] : memref<64x32xf32, #tpu.memory_space<vmem>>, vector<64x32xf32>
    %cst_58 = arith.constant dense<0.000000e+00> : vector<16x32xf32>
    %143 = tpu.matmul %141, %142, %cst_58 {dimension_numbers = #tpu.dot_dimension_numbers<[1], [0], [0], [1], [0, 0, 1, 1], [], []>} : vector<16x64xf32>, vector<64x32xf32>, vector<16x32xf32> -> vector<16x32xf32>
    %c0_59 = arith.constant 0 : index
    %c0_60 = arith.constant 0 : index
    %144 = vector.load %arg13[%c0_59, %c0_60] : memref<1x32xf32, #tpu.memory_space<vmem>>, vector<1x32xf32>
    %145 = vector.broadcast %144 : vector<1x32xf32> to vector<16x32xf32>
    %146 = arith.addf %143, %145 : vector<16x32xf32>
    %147 = arith.addf %111, %146 : vector<16x32xf32>
    %c0_61 = arith.constant 0 : index
    %c0_62 = arith.constant 0 : index
    %148 = vector.load %arg14[%c0_61, %c0_62] : memref<16x32xf32, #tpu.memory_space<vmem>>, vector<16x32xf32>
    tpu.vector_store %arg14[%c0_61, %c0_62], %147 {strides = array<i32>} : memref<16x32xf32, #tpu.memory_space<vmem>>, vector<16x32xf32>,
    return
  }
}

</mosaic_0001>

<llo_original>
// kernel: tpu_custom_call.1
$region0: #{tpu_custom_call.1}
  #allocation0 [shape = 'u32[]', space=smem, size = 0x4, offset = 0x4, fixed_abs, tag = 'smem constant byte address 0x4 - core index']
  #allocation1 [shape = 'u32[144,128]{1,0:T(1,128)}', space=vmem, size = 0x12000, scoped, tag = 'internal scratch']
  %s0 = inlined_call_operand.hbm [shape: f32[16,32], index: 0, kind: input, shape index: {}]
  %s1 = inlined_call_operand.vmem [shape: f32[2,8], index: 1, kind: input, shape index: {}]
  %s2 = inlined_call_operand.vmem [shape: f32[1,32], index: 2, kind: input, shape index: {}]
  %s3 = inlined_call_operand.vmem [shape: f32[1,32], index: 3, kind: input, shape index: {}]
  %s4 = inlined_call_operand.vmem [shape: f32[32,96], index: 4, kind: input, shape index: {}]
  %s5 = inlined_call_operand.vmem [shape: f32[1,96], index: 5, kind: input, shape index: {}]
  %s6 = inlined_call_operand.vmem [shape: f32[32,32], index: 6, kind: input, shape index: {}]
  %s7 = inlined_call_operand.vmem [shape: f32[1,32], index: 7, kind: input, shape index: {}]
  %s8 = inlined_call_operand.vmem [shape: f32[1,32], index: 8, kind: input, shape index: {}]
  %s9 = inlined_call_operand.vmem [shape: f32[1,32], index: 9, kind: input, shape index: {}]
  %s10 = inlined_call_operand.vmem [shape: f32[32,64], index: 10, kind: input, shape index: {}]
  %s11 = inlined_call_operand.vmem [shape: f32[1,64], index: 11, kind: input, shape index: {}]
  %s12 = inlined_call_operand.vmem [shape: f32[64,32], index: 12, kind: input, shape index: {}]
  %s13 = inlined_call_operand.vmem [shape: f32[1,32], index: 13, kind: input, shape index: {}]
  %s14 = inlined_call_operand.hbm [shape: f32[16,32], index: 14, kind: output, shape index: {}]
  %s15 = sld [smem:[#allocation0]]
  $region70: #{tpu_custom_call.1} parent=0
    _
  %s17 = ssub.s32 1, %s15
  %s18 = scalar_select 0, %s17, %s15
  $region1: #{tpu_custom_call.1} parent=0
    #allocation2 [shape = 'u8[8192]{0}', space=vmem, size = 0x2000, scoped, tag = 'input window, operand 0, single buffered']
    #allocation3 [shape = 's32[1]{0}', space=sflag, size = 0x4, scoped, tag = 'scoped memory for tpu_custom_call.1']
    #allocation4 [shape = 's32[1]{0}', space=sflag, size = 0x4, scoped, tag = 'scoped memory for tpu_custom_call.1']
    #allocation5 [shape = 'u8[8192]{0}', space=vmem, size = 0x2000, scoped, tag = 'output window, operand 0, single buffered']
    %19 = vsyncpa [#allocation3], 0
    %20 = vsyncpa [#allocation4], 0
    // Predicated region
    $region2: #{tpu_custom_call.1} parent=1 // pred_check
      _
    $region3: #{tpu_custom_call.1} parent=1 // pred_check_branch
      %22 = sbr.rel (0) target = $region5
    $region4: #{tpu_custom_call.1} parent=1 // pred_region
      %s24 = ssub.s32 256, 256
      %25 = vsyncadd [#allocation3], %s24
      %s26 = sshll.u32 [#allocation2], 4
      %s27 = int_to_ptr.vmem [resolvable:$true] %s26
      %32 = dma.hbm_to_vmem [thread:$0]  %s0, 256, %s27, [#allocation3], 128, 128, 8
    $region5: #{tpu_custom_call.1} parent=1 // pred_fallthru
      _
    // Predicated region
    $region6: #{tpu_custom_call.1} parent=1 // pred_check
      _
    $region7: #{tpu_custom_call.1} parent=1 // pred_check_branch
      %34 = sbr.rel (0) target = $region9
    $region8: #{tpu_custom_call.1} parent=1 // pred_region
      _
    $region9: #{tpu_custom_call.1} parent=1 // pred_fallthru
      _
    // Predicated region
    $region10: #{tpu_custom_call.1} parent=1 // pred_check
      _
    $region11: #{tpu_custom_call.1} parent=1 // pred_check_branch
      %36 = sbr.rel (0) target = $region13
    $region12: #{tpu_custom_call.1} parent=1 // pred_region
      _
    $region13: #{tpu_custom_call.1} parent=1 // pred_fallthru
      _
    // Predicated region
    $region14: #{tpu_custom_call.1} parent=1 // pred_check
      _
    $region15: #{tpu_custom_call.1} parent=1 // pred_check_branch
      %38 = sbr.rel (0) target = $region17
    $region16: #{tpu_custom_call.1} parent=1 // pred_region
      _
    $region17: #{tpu_custom_call.1} parent=1 // pred_fallthru
      _
    // Predicated region
    $region18: #{tpu_custom_call.1} parent=1 // pred_check
      _
    $region19: #{tpu_custom_call.1} parent=1 // pred_check_branch
      %40 = sbr.rel (0) target = $region21
    $region20: #{tpu_custom_call.1} parent=1 // pred_region
      _
    $region21: #{tpu_custom_call.1} parent=1 // pred_fallthru
      _
    // Predicated region
    $region22: #{tpu_custom_call.1} parent=1 // pred_check
      _
    $region23: #{tpu_custom_call.1} parent=1 // pred_check_branch
      %42 = sbr.rel (0) target = $region25
    $region24: #{tpu_custom_call.1} parent=1 // pred_region
      _
    $region25: #{tpu_custom_call.1} parent=1 // pred_fallthru
      _
    // Predicated region
    $region26: #{tpu_custom_call.1} parent=1 // pred_check
      _
    $region27: #{tpu_custom_call.1} parent=1 // pred_check_branch
      %44 = sbr.rel (0) target = $region29
    $region28: #{tpu_custom_call.1} parent=1 // pred_region
      _
    $region29: #{tpu_custom_call.1} parent=1 // pred_fallthru
      _
    // Predicated region
    $region30: #{tpu_custom_call.1} parent=1 // pred_check
      _
    $region31: #{tpu_custom_call.1} parent=1 // pred_check_branch
      %46 = sbr.rel (0) target = $region33
    $region32: #{tpu_custom_call.1} parent=1 // pred_region
      _
    $region33: #{tpu_custom_call.1} parent=1 // pred_fallthru
      _
    // Predicated region
    $region34: #{tpu_custom_call.1} parent=1 // pred_check
      _
    $region35: #{tpu_custom_call.1} parent=1 // pred_check_branch
      %48 = sbr.rel (0) target = $region37
    $region36: #{tpu_custom_call.1} parent=1 // pred_region
      _
    $region37: #{tpu_custom_call.1} parent=1 // pred_fallthru
      _
    // Predicated region
    $region38: #{tpu_custom_call.1} parent=1 // pred_check
      _
    $region39: #{tpu_custom_call.1} parent=1 // pred_check_branch
      %50 = sbr.rel (0) target = $region41
    $region40: #{tpu_custom_call.1} parent=1 // pred_region
      _
    $region41: #{tpu_custom_call.1} parent=1 // pred_fallthru
      _
    // Predicated region
    $region42: #{tpu_custom_call.1} parent=1 // pred_check
      _
    $region43: #{tpu_custom_call.1} parent=1 // pred_check_branch
      %52 = sbr.rel (0) target = $region45
    $region44: #{tpu_custom_call.1} parent=1 // pred_region
      _
    $region45: #{tpu_custom_call.1} parent=1 // pred_fallthru
      _
    // Predicated region
    $region46: #{tpu_custom_call.1} parent=1 // pred_check
      _
    $region47: #{tpu_custom_call.1} parent=1 // pred_check_branch
      %54 = sbr.rel (0) target = $region49
    $region48: #{tpu_custom_call.1} parent=1 // pred_region
      _
    $region49: #{tpu_custom_call.1} parent=1 // pred_fallthru
      _
    // Predicated region
    $region50: #{tpu_custom_call.1} parent=1 // pred_check
      _
    $region51: #{tpu_custom_call.1} parent=1 // pred_check_branch
      %56 = sbr.rel (0) target = $region53
    $region52: #{tpu_custom_call.1} parent=1 // pred_region
      _
    $region53: #{tpu_custom_call.1} parent=1 // pred_fallthru
      _
    // Predicated region
    $region54: #{tpu_custom_call.1} parent=1 // pred_check
      _
    $region55: #{tpu_custom_call.1} parent=1 // pred_check_branch
      %58 = sbr.rel (0) target = $region57
    $region56: #{tpu_custom_call.1} parent=1 // pred_region
      _
    $region57: #{tpu_custom_call.1} parent=1 // pred_fallthru
      _
    // Predicated region
    $region58: #{tpu_custom_call.1} parent=1 // pred_check
      _
    $region59: #{tpu_custom_call.1} parent=1 // pred_check_branch
      %60 = sbr.rel (0) target = $region61
    $region60: #{tpu_custom_call.1} parent=1 // pred_region
      %61 = dma.done [#allocation3], 256
    $region61: #{tpu_custom_call.1} parent=1 // pred_fallthru
      _
    %v62 = vld [vmem:[#allocation2] sm:$0xff]
    %v63 = vld [vmem:[#allocation2 + $0x8] sm:$0xff]
    %v64 = vld [vmem:[%s2] sm:$0x1]
    %v65 = vld [vmem:[%s3] sm:$0x1]
    %vm66 = vcmask 261120
    %v67 = vsel %vm66, %v62, 0.0
    %68 = vadd.xlane.f32.xlu0 %v67
    %v69 = vpop.xlane.xlu0 %68
    %v70 = vsel %vm66, %v63, 0.0
    %71 = vadd.xlane.f32.xlu0 %v70
    %v72 = vpop.xlane.xlu0 %71
    %v73 = vrcp.pop 32.0
    %v74 = vmul.f32 %v69, %v73
    %v75 = vmul.f32 %v72, %v73
    %v76 = vsub.f32 %v62, %v74
    %v77 = vsub.f32 %v63, %v75
    %v78 = vmul.f32 %v76, %v76
    %v79 = vmul.f32 %v77, %v77
    %v80 = vsel %vm66, %v78, 0.0
    %81 = vadd.xlane.f32.xlu0 %v80
    %v82 = vpop.xlane.xlu0 %81
    %v83 = vsel %vm66, %v79, 0.0
    %84 = vadd.xlane.f32.xlu0 %v83
    %v85 = vpop.xlane.xlu0 %84
    %v86 = vmul.f32 %v82, 0.032258064
    %v87 = vmul.f32 %v85, 0.032258064
    %v88 = vrsqrt.pop %v86
    %v89 = vmul.f32 %v86, %v88
    %vm90 = vcmp.eq.f32.partialorder %v86, inf
    %v91 = vsel %vm90, %v86, %v89
    %vm92 = vcmp.eq.f32.partialorder %v86, 0.0
    %v93 = vand.u32 %v86, 2147483648
    %v94 = vsel %vm92, %v93, %v91
    %v95 = vrsqrt.pop %v87
    %v96 = vmul.f32 %v87, %v95
    %vm97 = vcmp.eq.f32.partialorder %v87, inf
    %v98 = vsel %vm97, %v87, %v96
    %vm99 = vcmp.eq.f32.partialorder %v87, 0.0
    %v100 = vand.u32 %v87, 2147483648
    %v101 = vsel %vm99, %v100, %v98
    %v102 = vadd.f32 %v94, 1e-06
    %v103 = vadd.f32 %v101, 1e-06
    %v104 = vrcp.pop %v102
    %v105 = vrcp.pop %v103
    %v106 = vmul.f32 %v76, %v104
    %v107 = vmul.f32 %v77, %v105
    %v109 = vlaneseq
    %v110 = vshrl.u32 %v109, 7
    %v111 = vsub.s32 0, %v110
    %v112 = vrot.slane %v64, %v111
    %v114 = vmul.f32 %v112, %v106
    %v115 = vmul.f32 %v112, %v107
    %v117 = vlaneseq
    %v118 = vshrl.u32 %v117, 7
    %v119 = vsub.s32 0, %v118
    %v120 = vrot.slane %v65, %v119
    %v122 = vadd.f32 %v114, %v120
    %v123 = vadd.f32 %v115, %v120
    %v124 = vld [vmem:[%s4] sm:$0xff]
    %v125 = vld [vmem:[%s4 + $0x8] sm:$0xff]
    %v126 = vld [vmem:[%s4 + $0x10] sm:$0xff]
    %v127 = vld [vmem:[%s4 + $0x18] sm:$0xff]
    %v128 = vld [vmem:[%s5] sm:$0x1]
    %v130 = vlaneseq
    %v131 = vshrl.u32 %v130, 7
    %v132 = vsub.s32 0, %v131
    %v133 = vrot.slane %v128, %v132
    %v136 = vsel %vm66, %v122, 0
    %v139 = vsel %vm66, %v123, 0
    %141 = vmatprep.subr.mxu0 0.0
    %142 = vmatpush1.msra.mxu0 %v124
    %143 = vmatprep.subr.mxu0 0.0
    %144 = vmatpush1.msra.mxu0 %v125
    %145 = vmatprep.subr.mxu0 0.0
    %146 = vmatpush1.msra.mxu0 %v126
    %147 = vmatprep.subr.mxu0 0.0
    %148 = vmatpush1.msra.mxu0 %v127
    %149 = vmatprep.subr.mxu0 0.0
    %150 = vmatpush1.msra.mxu0 0.0
    %151 = vmatprep.subr.mxu0 0.0
    %152 = vmatpush1.msra.mxu0 0.0
    %153 = vmatprep.subr.mxu0 0.0
    %154 = vmatpush1.msra.mxu0 0.0
    %155 = vmatprep.subr.mxu0 0.0
    %156 = vmatpush1.msra.mxu0 0.0
    %157 = vmatprep.subr.mxu0 0.0
    %158 = vmatpush1.msra.mxu0 0.0
    %159 = vmatprep.subr.mxu0 0.0
    %160 = vmatpush1.msra.mxu0 0.0
    %161 = vmatprep.subr.mxu0 0.0
    %162 = vmatpush1.msra.mxu0 0.0
    %163 = vmatprep.subr.mxu0 0.0
    %164 = vmatpush1.msra.mxu0 0.0
    %165 = vmatprep.subr.mxu0 0.0
    %166 = vmatpush1.msra.mxu0 0.0
    %167 = vmatprep.subr.mxu0 0.0
    %168 = vmatpush1.msra.mxu0 0.0
    %169 = vmatprep.subr.mxu0 0.0
    %170 = vmatpush1.msra.mxu0 0.0
    %171 = vmatprep.subr.mxu0 0.0
    %172 = vmatpush1.msra.mxu0 0.0
    %173 = vmatprep.subr.mxu0 0.0
    %174 = vmatpush1.msra.mxu0 0.0
    %175 = vmatprep.subr.mxu0 0.0
    %176 = vmatpush1.msra.mxu0 0.0
    %177 = vmatprep.subr.mxu0 0.0
    %178 = vmatpush1.msra.mxu0 0.0
    %179 = vmatprep.subr.mxu0 0.0
    %180 = vmatpush1.msra.mxu0 0.0
    %181 = vmatprep.subr.mxu0 0.0
    %182 = vmatpush1.msra.mxu0 0.0
    %183 = vmatprep.subr.mxu0 0.0
    %184 = vmatpush1.msra.mxu0 0.0
    %185 = vmatprep.subr.mxu0 0.0
    %186 = vmatpush1.msra.mxu0 0.0
    %187 = vmatprep.subr.mxu0 0.0
    %188 = vmatpush1.msra.mxu0 0.0
    %189 = vmatprep.subr.mxu0 0.0
    %190 = vmatpush1.msra.mxu0 0.0
    %191 = vmatprep.subr.mxu0 0.0
    %192 = vmatpush1.msra.mxu0 0.0
    %193 = vmatprep.subr.mxu0 0.0
    %194 = vmatpush1.msra.mxu0 0.0
    %195 = vmatprep.subr.mxu0 0.0
    %196 = vmatpush1.msra.mxu0 0.0
    %197 = vmatprep.subr.mxu0 0.0
    %198 = vmatpush1.msra.mxu0 0.0
    %199 = vmatprep.subr.mxu0 0.0
    %200 = vmatpush1.msra.mxu0 0.0
    %201 = vmatprep.subr.mxu0 0.0
    %202 = vmatpush1.msra.mxu0 0.0
    %203 = vmatprep.subr.mxu0 0.0
    %204 = vmatpush1.msra.mxu0 0.0
    %205 = vmatprep.mubr.f32.mxu0 0.0
    %206 = vmatmul.mubr.f32.gmra.mrb[0].mxu0 %v136
    %v207 = vpop.f32.mrb[0].mxu0
    %v208 = vadd.f32 %v133, %v207
    %v209 = vpop.f32.mrb[0].mxu0
    %210 = vmatprep.mubr.f32.mxu0 0.0
    %211 = vmatmul.mubr.f32.gmra.mrb[0].mxu0 %v139
    %v212 = vpop.f32.mrb[0].mxu0
    %v213 = vadd.f32 %v133, %v212
    %v214 = vpop.f32.mrb[0].mxu0
    %215 = vdwg.mxu0
    %v216 = vld [vmem:[%s1] sm:$0x3]
    %v217 = vsub.f32 %v216, 1.0
    %v218 = vmul.f32 %v217, 1e+09
    %v219 = vlaneseq
    %v220 = vshrl.u32 %v219, 7
    %v221 = vsub.s32 0, %v220
    %v222 = vrot.slane %v218, %v221
    %v223 = vlaneseq
    %v224 = vshrl.u32 %v223, 7
    %v225 = vsub.s32 1, %v224
    %v226 = vrot.slane %v218, %v225
    %228 = vrot.lane.b32.xlu0 %v208, 96
    %v229 = vpop.permute.xlu0 %228
    %vm230 = vcmask 64512
    %v231 = vsel %vm230, %v208, 0
    %v233 = vsel %vm230, %v229, 0
    %235 = vmatprep.subr.mxu0 0.0
    %236 = vmatpush1.xpose.msra.mxu0 %v233
    %237 = vmatprep.subr.mxu0 0.0
    %238 = vmatpush1.xpose.msra.mxu0 0.0
    %239 = vmatprep.subr.mxu0 0.0
    %240 = vmatpush1.xpose.msra.mxu0 0.0
    %241 = vmatprep.subr.mxu0 0.0
    %242 = vmatpush1.xpose.msra.mxu0 0.0
    %243 = vmatprep.subr.mxu0 0.0
    %244 = vmatpush1.xpose.msra.mxu0 0.0
    %245 = vmatprep.subr.mxu0 0.0
    %246 = vmatpush1.xpose.msra.mxu0 0.0
    %247 = vmatprep.subr.mxu0 0.0
    %248 = vmatpush1.xpose.msra.mxu0 0.0
    %249 = vmatprep.subr.mxu0 0.0
    %250 = vmatpush1.xpose.msra.mxu0 0.0
    %251 = vmatprep.subr.mxu0 0.0
    %252 = vmatpush1.xpose.msra.mxu0 0.0
    %253 = vmatprep.subr.mxu0 0.0
    %254 = vmatpush1.xpose.msra.mxu0 0.0
    %255 = vmatprep.subr.mxu0 0.0
    %256 = vmatpush1.xpose.msra.mxu0 0.0
    %257 = vmatprep.subr.mxu0 0.0
    %258 = vmatpush1.xpose.msra.mxu0 0.0
    %259 = vmatprep.subr.mxu0 0.0
    %260 = vmatpush1.xpose.msra.mxu0 0.0
    %261 = vmatprep.subr.mxu0 0.0
    %262 = vmatpush1.xpose.msra.mxu0 0.0
    %263 = vmatprep.subr.mxu0 0.0
    %264 = vmatpush1.xpose.msra.mxu0 0.0
    %265 = vmatprep.subr.mxu0 0.0
    %266 = vmatpush1.xpose.msra.mxu0 0.0
    %267 = vmatprep.subr.mxu0 0.0
    %268 = vmatpush1.xpose.msra.mxu0 0.0
    %269 = vmatprep.subr.mxu0 0.0
    %270 = vmatpush1.xpose.msra.mxu0 0.0
    %271 = vmatprep.subr.mxu0 0.0
    %272 = vmatpush1.xpose.msra.mxu0 0.0
    %273 = vmatprep.subr.mxu0 0.0
    %274 = vmatpush1.xpose.msra.mxu0 0.0
    %275 = vmatprep.subr.mxu0 0.0
    %276 = vmatpush1.xpose.msra.mxu0 0.0
    %277 = vmatprep.subr.mxu0 0.0
    %278 = vmatpush1.xpose.msra.mxu0 0.0
    %279 = vmatprep.subr.mxu0 0.0
    %280 = vmatpush1.xpose.msra.mxu0 0.0
    %281 = vmatprep.subr.mxu0 0.0
    %282 = vmatpush1.xpose.msra.mxu0 0.0
    %283 = vmatprep.subr.mxu0 0.0
    %284 = vmatpush1.xpose.msra.mxu0 0.0
    %285 = vmatprep.subr.mxu0 0.0
    %286 = vmatpush1.xpose.msra.mxu0 0.0
    %287 = vmatprep.subr.mxu0 0.0
    %288 = vmatpush1.xpose.msra.mxu0 0.0
    %289 = vmatprep.subr.mxu0 0.0
    %290 = vmatpush1.xpose.msra.mxu0 0.0
    %291 = vmatprep.subr.mxu0 0.0
    %292 = vmatpush1.xpose.msra.mxu0 0.0
    %293 = vmatprep.subr.mxu0 0.0
    %294 = vmatpush1.xpose.msra.mxu0 0.0
    %295 = vmatprep.subr.mxu0 0.0
    %296 = vmatpush1.xpose.msra.mxu0 0.0
    %297 = vmatprep.subr.mxu0 0.0
    %298 = vmatpush1.xpose.msra.mxu0 0.0
    %299 = vmatprep.mubr.f32.mxu0 0.0
    %300 = vmatmul.mubr.f32.gmra.mrb[0].mxu0 %v231
    %v301 = vpop.f32.mrb[0].mxu0
    %v302 = vadd.f32 0.0, %v301
    %v303 = vpop.f32.mrb[0].mxu0
    %304 = vdwg.mxu0
    %305 = vrot.lane.b32.xlu0 %v208, 120
    %v306 = vpop.permute.xlu0 %305
    %307 = vrot.lane.b32.xlu0 %v208, 88
    %v308 = vpop.permute.xlu0 %307
    %v309 = vsel %vm230, %v306, 0
    %v311 = vsel %vm230, %v308, 0
    %313 = vmatprep.subr.mxu0 0.0
    %314 = vmatpush1.xpose.msra.mxu0 %v311
    %315 = vmatprep.subr.mxu0 0.0
    %316 = vmatpush1.xpose.msra.mxu0 0.0
    %317 = vmatprep.subr.mxu0 0.0
    %318 = vmatpush1.xpose.msra.mxu0 0.0
    %319 = vmatprep.subr.mxu0 0.0
    %320 = vmatpush1.xpose.msra.mxu0 0.0
    %321 = vmatprep.subr.mxu0 0.0
    %322 = vmatpush1.xpose.msra.mxu0 0.0
    %323 = vmatprep.subr.mxu0 0.0
    %324 = vmatpush1.xpose.msra.mxu0 0.0
    %325 = vmatprep.subr.mxu0 0.0
    %326 = vmatpush1.xpose.msra.mxu0 0.0
    %327 = vmatprep.subr.mxu0 0.0
    %328 = vmatpush1.xpose.msra.mxu0 0.0
    %329 = vmatprep.subr.mxu0 0.0
    %330 = vmatpush1.xpose.msra.mxu0 0.0
    %331 = vmatprep.subr.mxu0 0.0
    %332 = vmatpush1.xpose.msra.mxu0 0.0
    %333 = vmatprep.subr.mxu0 0.0
    %334 = vmatpush1.xpose.msra.mxu0 0.0
    %335 = vmatprep.subr.mxu0 0.0
    %336 = vmatpush1.xpose.msra.mxu0 0.0
    %337 = vmatprep.subr.mxu0 0.0
    %338 = vmatpush1.xpose.msra.mxu0 0.0
    %339 = vmatprep.subr.mxu0 0.0
    %340 = vmatpush1.xpose.msra.mxu0 0.0
    %341 = vmatprep.subr.mxu0 0.0
    %342 = vmatpush1.xpose.msra.mxu0 0.0
    %343 = vmatprep.subr.mxu0 0.0
    %344 = vmatpush1.xpose.msra.mxu0 0.0
    %345 = vmatprep.subr.mxu0 0.0
    %346 = vmatpush1.xpose.msra.mxu0 0.0
    %347 = vmatprep.subr.mxu0 0.0
    %348 = vmatpush1.xpose.msra.mxu0 0.0
    %349 = vmatprep.subr.mxu0 0.0
    %350 = vmatpush1.xpose.msra.mxu0 0.0
    %351 = vmatprep.subr.mxu0 0.0
    %352 = vmatpush1.xpose.msra.mxu0 0.0
    %353 = vmatprep.subr.mxu0 0.0
    %354 = vmatpush1.xpose.msra.mxu0 0.0
    %355 = vmatprep.subr.mxu0 0.0
    %356 = vmatpush1.xpose.msra.mxu0 0.0
    %357 = vmatprep.subr.mxu0 0.0
    %358 = vmatpush1.xpose.msra.mxu0 0.0
    %359 = vmatprep.subr.mxu0 0.0
    %360 = vmatpush1.xpose.msra.mxu0 0.0
    %361 = vmatprep.subr.mxu0 0.0
    %362 = vmatpush1.xpose.msra.mxu0 0.0
    %363 = vmatprep.subr.mxu0 0.0
    %364 = vmatpush1.xpose.msra.mxu0 0.0
    %365 = vmatprep.subr.mxu0 0.0
    %366 = vmatpush1.xpose.msra.mxu0 0.0
    %367 = vmatprep.subr.mxu0 0.0
    %368 = vmatpush1.xpose.msra.mxu0 0.0
    %369 = vmatprep.subr.mxu0 0.0
    %370 = vmatpush1.xpose.msra.mxu0 0.0
    %371 = vmatprep.subr.mxu0 0.0
    %372 = vmatpush1.xpose.msra.mxu0 0.0
    %373 = vmatprep.subr.mxu0 0.0
    %374 = vmatpush1.xpose.msra.mxu0 0.0
    %375 = vmatprep.subr.mxu0 0.0
    %376 = vmatpush1.xpose.msra.mxu0 0.0
    %377 = vmatprep.mubr.f32.mxu0 0.0
    %378 = vmatmul.mubr.f32.gmra.mrb[0].mxu0 %v309
    %v379 = vpop.f32.mrb[0].mxu0
    %v380 = vadd.f32 0.0, %v379
    %v381 = vpop.f32.mrb[0].mxu0
    %382 = vdwg.mxu0
    %383 = vrot.lane.b32.xlu0 %v208, 112
    %v384 = vpop.permute.xlu0 %383
    %385 = vrot.lane.b32.xlu0 %v208, 80
    %v386 = vpop.permute.xlu0 %385
    %v387 = vsel %vm230, %v384, 0
    %v389 = vsel %vm230, %v386, 0
    %391 = vmatprep.subr.mxu0 0.0
    %392 = vmatpush1.xpose.msra.mxu0 %v389
    %393 = vmatprep.subr.mxu0 0.0
    %394 = vmatpush1.xpose.msra.mxu0 0.0
    %395 = vmatprep.subr.mxu0 0.0
    %396 = vmatpush1.xpose.msra.mxu0 0.0
    %397 = vmatprep.subr.mxu0 0.0
    %398 = vmatpush1.xpose.msra.mxu0 0.0
    %399 = vmatprep.subr.mxu0 0.0
    %400 = vmatpush1.xpose.msra.mxu0 0.0
    %401 = vmatprep.subr.mxu0 0.0
    %402 = vmatpush1.xpose.msra.mxu0 0.0
    %403 = vmatprep.subr.mxu0 0.0
    %404 = vmatpush1.xpose.msra.mxu0 0.0
    %405 = vmatprep.subr.mxu0 0.0
    %406 = vmatpush1.xpose.msra.mxu0 0.0
    %407 = vmatprep.subr.mxu0 0.0
    %408 = vmatpush1.xpose.msra.mxu0 0.0
    %409 = vmatprep.subr.mxu0 0.0
    %410 = vmatpush1.xpose.msra.mxu0 0.0
    %411 = vmatprep.subr.mxu0 0.0
    %412 = vmatpush1.xpose.msra.mxu0 0.0
    %413 = vmatprep.subr.mxu0 0.0
    %414 = vmatpush1.xpose.msra.mxu0 0.0
    %415 = vmatprep.subr.mxu0 0.0
    %416 = vmatpush1.xpose.msra.mxu0 0.0
    %417 = vmatprep.subr.mxu0 0.0
    %418 = vmatpush1.xpose.msra.mxu0 0.0
    %419 = vmatprep.subr.mxu0 0.0
    %420 = vmatpush1.xpose.msra.mxu0 0.0
    %421 = vmatprep.subr.mxu0 0.0
    %422 = vmatpush1.xpose.msra.mxu0 0.0
    %423 = vmatprep.subr.mxu0 0.0
    %424 = vmatpush1.xpose.msra.mxu0 0.0
    %425 = vmatprep.subr.mxu0 0.0
    %426 = vmatpush1.xpose.msra.mxu0 0.0
    %427 = vmatprep.subr.mxu0 0.0
    %428 = vmatpush1.xpose.msra.mxu0 0.0
    %429 = vmatprep.subr.mxu0 0.0
    %430 = vmatpush1.xpose.msra.mxu0 0.0
    %431 = vmatprep.subr.mxu0 0.0
    %432 = vmatpush1.xpose.msra.mxu0 0.0
    %433 = vmatprep.subr.mxu0 0.0
    %434 = vmatpush1.xpose.msra.mxu0 0.0
    %435 = vmatprep.subr.mxu0 0.0
    %436 = vmatpush1.xpose.msra.mxu0 0.0
    %437 = vmatprep.subr.mxu0 0.0
    %438 = vmatpush1.xpose.msra.mxu0 0.0
    %439 = vmatprep.subr.mxu0 0.0
    %440 = vmatpush1.xpose.msra.mxu0 0.0
    %441 = vmatprep.subr.mxu0 0.0
    %442 = vmatpush1.xpose.msra.mxu0 0.0
    %443 = vmatprep.subr.mxu0 0.0
    %444 = vmatpush1.xpose.msra.mxu0 0.0
    %445 = vmatprep.subr.mxu0 0.0
    %446 = vmatpush1.xpose.msra.mxu0 0.0
    %447 = vmatprep.subr.mxu0 0.0
    %448 = vmatpush1.xpose.msra.mxu0 0.0
    %449 = vmatprep.subr.mxu0 0.0
    %450 = vmatpush1.xpose.msra.mxu0 0.0
    %451 = vmatprep.subr.mxu0 0.0
    %452 = vmatpush1.xpose.msra.mxu0 0.0
    %453 = vmatprep.subr.mxu0 0.0
    %454 = vmatpush1.xpose.msra.mxu0 0.0
    %455 = vmatprep.mubr.f32.mxu0 0.0
    %456 = vmatmul.mubr.f32.gmra.mrb[0].mxu0 %v387
    %v457 = vpop.f32.mrb[0].mxu0
    %v458 = vadd.f32 0.0, %v457
    %v459 = vpop.f32.mrb[0].mxu0
    %460 = vdwg.mxu0
    %461 = vrot.lane.b32.xlu0 %v208, 104
    %v462 = vpop.permute.xlu0 %461
    %463 = vrot.lane.b32.xlu0 %v208, 72
    %v464 = vpop.permute.xlu0 %463
    %v465 = vsel %vm230, %v462, 0
    %v467 = vsel %vm230, %v464, 0
    %469 = vmatprep.subr.mxu0 0.0
    %470 = vmatpush1.xpose.msra.mxu0 %v467
    %471 = vmatprep.subr.mxu0 0.0
    %472 = vmatpush1.xpose.msra.mxu0 0.0
    %473 = vmatprep.subr.mxu0 0.0
    %474 = vmatpush1.xpose.msra.mxu0 0.0
    %475 = vmatprep.subr.mxu0 0.0
    %476 = vmatpush1.xpose.msra.mxu0 0.0
    %477 = vmatprep.subr.mxu0 0.0
    %478 = vmatpush1.xpose.msra.mxu0 0.0
    %479 = vmatprep.subr.mxu0 0.0
    %480 = vmatpush1.xpose.msra.mxu0 0.0
    %481 = vmatprep.subr.mxu0 0.0
    %482 = vmatpush1.xpose.msra.mxu0 0.0
    %483 = vmatprep.subr.mxu0 0.0
    %484 = vmatpush1.xpose.msra.mxu0 0.0
    %485 = vmatprep.subr.mxu0 0.0
    %486 = vmatpush1.xpose.msra.mxu0 0.0
    %487 = vmatprep.subr.mxu0 0.0
    %488 = vmatpush1.xpose.msra.mxu0 0.0
    %489 = vmatprep.subr.mxu0 0.0
    %490 = vmatpush1.xpose.msra.mxu0 0.0
    %491 = vmatprep.subr.mxu0 0.0
    %492 = vmatpush1.xpose.msra.mxu0 0.0
    %493 = vmatprep.subr.mxu0 0.0
    %494 = vmatpush1.xpose.msra.mxu0 0.0
    %495 = vmatprep.subr.mxu0 0.0
    %496 = vmatpush1.xpose.msra.mxu0 0.0
    %497 = vmatprep.subr.mxu0 0.0
    %498 = vmatpush1.xpose.msra.mxu0 0.0
    %499 = vmatprep.subr.mxu0 0.0
    %500 = vmatpush1.xpose.msra.mxu0 0.0
    %501 = vmatprep.subr.mxu0 0.0
    %502 = vmatpush1.xpose.msra.mxu0 0.0
    %503 = vmatprep.subr.mxu0 0.0
    %504 = vmatpush1.xpose.msra.mxu0 0.0
    %505 = vmatprep.subr.mxu0 0.0
    %506 = vmatpush1.xpose.msra.mxu0 0.0
    %507 = vmatprep.subr.mxu0 0.0
    %508 = vmatpush1.xpose.msra.mxu0 0.0
    %509 = vmatprep.subr.mxu0 0.0
    %510 = vmatpush1.xpose.msra.mxu0 0.0
    %511 = vmatprep.subr.mxu0 0.0
    %512 = vmatpush1.xpose.msra.mxu0 0.0
    %513 = vmatprep.subr.mxu0 0.0
    %514 = vmatpush1.xpose.msra.mxu0 0.0
    %515 = vmatprep.subr.mxu0 0.0
    %516 = vmatpush1.xpose.msra.mxu0 0.0
    %517 = vmatprep.subr.mxu0 0.0
    %518 = vmatpush1.xpose.msra.mxu0 0.0
    %519 = vmatprep.subr.mxu0 0.0
    %520 = vmatpush1.xpose.msra.mxu0 0.0
    %521 = vmatprep.subr.mxu0 0.0
    %522 = vmatpush1.xpose.msra.mxu0 0.0
    %523 = vmatprep.subr.mxu0 0.0
    %524 = vmatpush1.xpose.msra.mxu0 0.0
    %525 = vmatprep.subr.mxu0 0.0
    %526 = vmatpush1.xpose.msra.mxu0 0.0
    %527 = vmatprep.subr.mxu0 0.0
    %528 = vmatpush1.xpose.msra.mxu0 0.0
    %529 = vmatprep.subr.mxu0 0.0
    %530 = vmatpush1.xpose.msra.mxu0 0.0
    %531 = vmatprep.subr.mxu0 0.0
    %532 = vmatpush1.xpose.msra.mxu0 0.0
    %533 = vmatprep.mubr.f32.mxu0 0.0
    %534 = vmatmul.mubr.f32.gmra.mrb[0].mxu0 %v465
    %v535 = vpop.f32.mrb[0].mxu0
    %v536 = vadd.f32 0.0, %v535
    %v537 = vpop.f32.mrb[0].mxu0
    %538 = vdwg.mxu0
    %540 = vrot.lane.b32.xlu0 %v213, 96
    %v541 = vpop.permute.xlu0 %540
    %v542 = vsel %vm230, %v213, 0
    %v544 = vsel %vm230, %v541, 0
    %546 = vmatprep.subr.mxu0 0.0
    %547 = vmatpush1.xpose.msra.mxu0 %v544
    %548 = vmatprep.subr.mxu0 0.0
    %549 = vmatpush1.xpose.msra.mxu0 0.0
    %550 = vmatprep.subr.mxu0 0.0
    %551 = vmatpush1.xpose.msra.mxu0 0.0
    %552 = vmatprep.subr.mxu0 0.0
    %553 = vmatpush1.xpose.msra.mxu0 0.0
    %554 = vmatprep.subr.mxu0 0.0
    %555 = vmatpush1.xpose.msra.mxu0 0.0
    %556 = vmatprep.subr.mxu0 0.0
    %557 = vmatpush1.xpose.msra.mxu0 0.0
    %558 = vmatprep.subr.mxu0 0.0
    %559 = vmatpush1.xpose.msra.mxu0 0.0
    %560 = vmatprep.subr.mxu0 0.0
    %561 = vmatpush1.xpose.msra.mxu0 0.0
    %562 = vmatprep.subr.mxu0 0.0
    %563 = vmatpush1.xpose.msra.mxu0 0.0
    %564 = vmatprep.subr.mxu0 0.0
    %565 = vmatpush1.xpose.msra.mxu0 0.0
    %566 = vmatprep.subr.mxu0 0.0
    %567 = vmatpush1.xpose.msra.mxu0 0.0
    %568 = vmatprep.subr.mxu0 0.0
    %569 = vmatpush1.xpose.msra.mxu0 0.0
    %570 = vmatprep.subr.mxu0 0.0
    %571 = vmatpush1.xpose.msra.mxu0 0.0
    %572 = vmatprep.subr.mxu0 0.0
    %573 = vmatpush1.xpose.msra.mxu0 0.0
    %574 = vmatprep.subr.mxu0 0.0
    %575 = vmatpush1.xpose.msra.mxu0 0.0
    %576 = vmatprep.subr.mxu0 0.0
    %577 = vmatpush1.xpose.msra.mxu0 0.0
    %578 = vmatprep.subr.mxu0 0.0
    %579 = vmatpush1.xpose.msra.mxu0 0.0
    %580 = vmatprep.subr.mxu0 0.0
    %581 = vmatpush1.xpose.msra.mxu0 0.0
    %582 = vmatprep.subr.mxu0 0.0
    %583 = vmatpush1.xpose.msra.mxu0 0.0
    %584 = vmatprep.subr.mxu0 0.0
    %585 = vmatpush1.xpose.msra.mxu0 0.0
    %586 = vmatprep.subr.mxu0 0.0
    %587 = vmatpush1.xpose.msra.mxu0 0.0
    %588 = vmatprep.subr.mxu0 0.0
    %589 = vmatpush1.xpose.msra.mxu0 0.0
    %590 = vmatprep.subr.mxu0 0.0
    %591 = vmatpush1.xpose.msra.mxu0 0.0
    %592 = vmatprep.subr.mxu0 0.0
    %593 = vmatpush1.xpose.msra.mxu0 0.0
    %594 = vmatprep.subr.mxu0 0.0
    %595 = vmatpush1.xpose.msra.mxu0 0.0
    %596 = vmatprep.subr.mxu0 0.0
    %597 = vmatpush1.xpose.msra.mxu0 0.0
    %598 = vmatprep.subr.mxu0 0.0
    %599 = vmatpush1.xpose.msra.mxu0 0.0
    %600 = vmatprep.subr.mxu0 0.0
    %601 = vmatpush1.xpose.msra.mxu0 0.0
    %602 = vmatprep.subr.mxu0 0.0
    %603 = vmatpush1.xpose.msra.mxu0 0.0
    %604 = vmatprep.subr.mxu0 0.0
    %605 = vmatpush1.xpose.msra.mxu0 0.0
    %606 = vmatprep.subr.mxu0 0.0
    %607 = vmatpush1.xpose.msra.mxu0 0.0
    %608 = vmatprep.subr.mxu0 0.0
    %609 = vmatpush1.xpose.msra.mxu0 0.0
    %610 = vmatprep.mubr.f32.mxu0 0.0
    %611 = vmatmul.mubr.f32.gmra.mrb[0].mxu0 %v542
    %v612 = vpop.f32.mrb[0].mxu0
    %v613 = vadd.f32 0.0, %v612
    %v614 = vpop.f32.mrb[0].mxu0
    %615 = vdwg.mxu0
    %616 = vrot.lane.b32.xlu0 %v213, 120
    %v617 = vpop.permute.xlu0 %616
    %618 = vrot.lane.b32.xlu0 %v213, 88
    %v619 = vpop.permute.xlu0 %618
    %v620 = vsel %vm230, %v617, 0
    %v622 = vsel %vm230, %v619, 0
    %624 = vmatprep.subr.mxu0 0.0
    %625 = vmatpush1.xpose.msra.mxu0 %v622
    %626 = vmatprep.subr.mxu0 0.0
    %627 = vmatpush1.xpose.msra.mxu0 0.0
    %628 = vmatprep.subr.mxu0 0.0
    %629 = vmatpush1.xpose.msra.mxu0 0.0
    %630 = vmatprep.subr.mxu0 0.0
    %631 = vmatpush1.xpose.msra.mxu0 0.0
    %632 = vmatprep.subr.mxu0 0.0
    %633 = vmatpush1.xpose.msra.mxu0 0.0
    %634 = vmatprep.subr.mxu0 0.0
    %635 = vmatpush1.xpose.msra.mxu0 0.0
    %636 = vmatprep.subr.mxu0 0.0
    %637 = vmatpush1.xpose.msra.mxu0 0.0
    %638 = vmatprep.subr.mxu0 0.0
    %639 = vmatpush1.xpose.msra.mxu0 0.0
    %640 = vmatprep.subr.mxu0 0.0
    %641 = vmatpush1.xpose.msra.mxu0 0.0
    %642 = vmatprep.subr.mxu0 0.0
    %643 = vmatpush1.xpose.msra.mxu0 0.0
    %644 = vmatprep.subr.mxu0 0.0
    %645 = vmatpush1.xpose.msra.mxu0 0.0
    %646 = vmatprep.subr.mxu0 0.0
    %647 = vmatpush1.xpose.msra.mxu0 0.0
    %648 = vmatprep.subr.mxu0 0.0
    %649 = vmatpush1.xpose.msra.mxu0 0.0
    %650 = vmatprep.subr.mxu0 0.0
    %651 = vmatpush1.xpose.msra.mxu0 0.0
    %652 = vmatprep.subr.mxu0 0.0
    %653 = vmatpush1.xpose.msra.mxu0 0.0
    %654 = vmatprep.subr.mxu0 0.0
    %655 = vmatpush1.xpose.msra.mxu0 0.0
    %656 = vmatprep.subr.mxu0 0.0
    %657 = vmatpush1.xpose.msra.mxu0 0.0
    %658 = vmatprep.subr.mxu0 0.0
    %659 = vmatpush1.xpose.msra.mxu0 0.0
    %660 = vmatprep.subr.mxu0 0.0
    %661 = vmatpush1.xpose.msra.mxu0 0.0
    %662 = vmatprep.subr.mxu0 0.0
    %663 = vmatpush1.xpose.msra.mxu0 0.0
    %664 = vmatprep.subr.mxu0 0.0
    %665 = vmatpush1.xpose.msra.mxu0 0.0
    %666 = vmatprep.subr.mxu0 0.0
    %667 = vmatpush1.xpose.msra.mxu0 0.0
    %668 = vmatprep.subr.mxu0 0.0
    %669 = vmatpush1.xpose.msra.mxu0 0.0
    %670 = vmatprep.subr.mxu0 0.0
    %671 = vmatpush1.xpose.msra.mxu0 0.0
    %672 = vmatprep.subr.mxu0 0.0
    %673 = vmatpush1.xpose.msra.mxu0 0.0
    %674 = vmatprep.subr.mxu0 0.0
    %675 = vmatpush1.xpose.msra.mxu0 0.0
    %676 = vmatprep.subr.mxu0 0.0
    %677 = vmatpush1.xpose.msra.mxu0 0.0
    %678 = vmatprep.subr.mxu0 0.0
    %679 = vmatpush1.xpose.msra.mxu0 0.0
    %680 = vmatprep.subr.mxu0 0.0
    %681 = vmatpush1.xpose.msra.mxu0 0.0
    %682 = vmatprep.subr.mxu0 0.0
    %683 = vmatpush1.xpose.msra.mxu0 0.0
    %684 = vmatprep.subr.mxu0 0.0
    %685 = vmatpush1.xpose.msra.mxu0 0.0
    %686 = vmatprep.subr.mxu0 0.0
    %687 = vmatpush1.xpose.msra.mxu0 0.0
    %688 = vmatprep.mubr.f32.mxu0 0.0
    %689 = vmatmul.mubr.f32.gmra.mrb[0].mxu0 %v620
    %v690 = vpop.f32.mrb[0].mxu0
    %v691 = vadd.f32 0.0, %v690
    %v692 = vpop.f32.mrb[0].mxu0
    %693 = vdwg.mxu0
    %694 = vrot.lane.b32.xlu0 %v213, 112
    %v695 = vpop.permute.xlu0 %694
    %696 = vrot.lane.b32.xlu0 %v213, 80
    %v697 = vpop.permute.xlu0 %696
    %v698 = vsel %vm230, %v695, 0
    %v700 = vsel %vm230, %v697, 0
    %702 = vmatprep.subr.mxu0 0.0
    %703 = vmatpush1.xpose.msra.mxu0 %v700
    %704 = vmatprep.subr.mxu0 0.0
    %705 = vmatpush1.xpose.msra.mxu0 0.0
    %706 = vmatprep.subr.mxu0 0.0
    %707 = vmatpush1.xpose.msra.mxu0 0.0
    %708 = vmatprep.subr.mxu0 0.0
    %709 = vmatpush1.xpose.msra.mxu0 0.0
    %710 = vmatprep.subr.mxu0 0.0
    %711 = vmatpush1.xpose.msra.mxu0 0.0
    %712 = vmatprep.subr.mxu0 0.0
    %713 = vmatpush1.xpose.msra.mxu0 0.0
    %714 = vmatprep.subr.mxu0 0.0
    %715 = vmatpush1.xpose.msra.mxu0 0.0
    %716 = vmatprep.subr.mxu0 0.0
    %717 = vmatpush1.xpose.msra.mxu0 0.0
    %718 = vmatprep.subr.mxu0 0.0
    %719 = vmatpush1.xpose.msra.mxu0 0.0
    %720 = vmatprep.subr.mxu0 0.0
    %721 = vmatpush1.xpose.msra.mxu0 0.0
    %722 = vmatprep.subr.mxu0 0.0
    %723 = vmatpush1.xpose.msra.mxu0 0.0
    %724 = vmatprep.subr.mxu0 0.0
    %725 = vmatpush1.xpose.msra.mxu0 0.0
    %726 = vmatprep.subr.mxu0 0.0
    %727 = vmatpush1.xpose.msra.mxu0 0.0
    %728 = vmatprep.subr.mxu0 0.0
    %729 = vmatpush1.xpose.msra.mxu0 0.0
    %730 = vmatprep.subr.mxu0 0.0
    %731 = vmatpush1.xpose.msra.mxu0 0.0
    %732 = vmatprep.subr.mxu0 0.0
    %733 = vmatpush1.xpose.msra.mxu0 0.0
    %734 = vmatprep.subr.mxu0 0.0
    %735 = vmatpush1.xpose.msra.mxu0 0.0
    %736 = vmatprep.subr.mxu0 0.0
    %737 = vmatpush1.xpose.msra.mxu0 0.0
    %738 = vmatprep.subr.mxu0 0.0
    %739 = vmatpush1.xpose.msra.mxu0 0.0
    %740 = vmatprep.subr.mxu0 0.0
    %741 = vmatpush1.xpose.msra.mxu0 0.0
    %742 = vmatprep.subr.mxu0 0.0
    %743 = vmatpush1.xpose.msra.mxu0 0.0
    %744 = vmatprep.subr.mxu0 0.0
    %745 = vmatpush1.xpose.msra.mxu0 0.0
    %746 = vmatprep.subr.mxu0 0.0
    %747 = vmatpush1.xpose.msra.mxu0 0.0
    %748 = vmatprep.subr.mxu0 0.0
    %749 = vmatpush1.xpose.msra.mxu0 0.0
    %750 = vmatprep.subr.mxu0 0.0
    %751 = vmatpush1.xpose.msra.mxu0 0.0
    %752 = vmatprep.subr.mxu0 0.0
    %753 = vmatpush1.xpose.msra.mxu0 0.0
    %754 = vmatprep.subr.mxu0 0.0
    %755 = vmatpush1.xpose.msra.mxu0 0.0
    %756 = vmatprep.subr.mxu0 0.0
    %757 = vmatpush1.xpose.msra.mxu0 0.0
    %758 = vmatprep.subr.mxu0 0.0
    %759 = vmatpush1.xpose.msra.mxu0 0.0
    %760 = vmatprep.subr.mxu0 0.0
    %761 = vmatpush1.xpose.msra.mxu0 0.0
    %762 = vmatprep.subr.mxu0 0.0
    %763 = vmatpush1.xpose.msra.mxu0 0.0
    %764 = vmatprep.subr.mxu0 0.0
    %765 = vmatpush1.xpose.msra.mxu0 0.0
    %766 = vmatprep.mubr.f32.mxu0 0.0
    %767 = vmatmul.mubr.f32.gmra.mrb[0].mxu0 %v698
    %v768 = vpop.f32.mrb[0].mxu0
    %v769 = vadd.f32 0.0, %v768
    %v770 = vpop.f32.mrb[0].mxu0
    %771 = vdwg.mxu0
    %772 = vrot.lane.b32.xlu0 %v213, 104
    %v773 = vpop.permute.xlu0 %772
    %774 = vrot.lane.b32.xlu0 %v213, 72
    %v775 = vpop.permute.xlu0 %774
    %v776 = vsel %vm230, %v773, 0
    %v778 = vsel %vm230, %v775, 0
    %780 = vmatprep.subr.mxu0 0.0
    %781 = vmatpush1.xpose.msra.mxu0 %v778
    %782 = vmatprep.subr.mxu0 0.0
    %783 = vmatpush1.xpose.msra.mxu0 0.0
    %784 = vmatprep.subr.mxu0 0.0
    %785 = vmatpush1.xpose.msra.mxu0 0.0
    %786 = vmatprep.subr.mxu0 0.0
    %787 = vmatpush1.xpose.msra.mxu0 0.0
    %788 = vmatprep.subr.mxu0 0.0
    %789 = vmatpush1.xpose.msra.mxu0 0.0
    %790 = vmatprep.subr.mxu0 0.0
    %791 = vmatpush1.xpose.msra.mxu0 0.0
    %792 = vmatprep.subr.mxu0 0.0
    %793 = vmatpush1.xpose.msra.mxu0 0.0
    %794 = vmatprep.subr.mxu0 0.0
    %795 = vmatpush1.xpose.msra.mxu0 0.0
    %796 = vmatprep.subr.mxu0 0.0
    %797 = vmatpush1.xpose.msra.mxu0 0.0
    %798 = vmatprep.subr.mxu0 0.0
    %799 = vmatpush1.xpose.msra.mxu0 0.0
    %800 = vmatprep.subr.mxu0 0.0
    %801 = vmatpush1.xpose.msra.mxu0 0.0
    %802 = vmatprep.subr.mxu0 0.0
    %803 = vmatpush1.xpose.msra.mxu0 0.0
    %804 = vmatprep.subr.mxu0 0.0
    %805 = vmatpush1.xpose.msra.mxu0 0.0
    %806 = vmatprep.subr.mxu0 0.0
    %807 = vmatpush1.xpose.msra.mxu0 0.0
    %808 = vmatprep.subr.mxu0 0.0
    %809 = vmatpush1.xpose.msra.mxu0 0.0
    %810 = vmatprep.subr.mxu0 0.0
    %811 = vmatpush1.xpose.msra.mxu0 0.0
    %812 = vmatprep.subr.mxu0 0.0
    %813 = vmatpush1.xpose.msra.mxu0 0.0
    %814 = vmatprep.subr.mxu0 0.0
    %815 = vmatpush1.xpose.msra.mxu0 0.0
    %816 = vmatprep.subr.mxu0 0.0
    %817 = vmatpush1.xpose.msra.mxu0 0.0
    %818 = vmatprep.subr.mxu0 0.0
    %819 = vmatpush1.xpose.msra.mxu0 0.0
    %820 = vmatprep.subr.mxu0 0.0
    %821 = vmatpush1.xpose.msra.mxu0 0.0
    %822 = vmatprep.subr.mxu0 0.0
    %823 = vmatpush1.xpose.msra.mxu0 0.0
    %824 = vmatprep.subr.mxu0 0.0
    %825 = vmatpush1.xpose.msra.mxu0 0.0
    %826 = vmatprep.subr.mxu0 0.0
    %827 = vmatpush1.xpose.msra.mxu0 0.0
    %828 = vmatprep.subr.mxu0 0.0
    %829 = vmatpush1.xpose.msra.mxu0 0.0
    %830 = vmatprep.subr.mxu0 0.0
    %831 = vmatpush1.xpose.msra.mxu0 0.0
    %832 = vmatprep.subr.mxu0 0.0
    %833 = vmatpush1.xpose.msra.mxu0 0.0
    %834 = vmatprep.subr.mxu0 0.0
    %835 = vmatpush1.xpose.msra.mxu0 0.0
    %836 = vmatprep.subr.mxu0 0.0
    %837 = vmatpush1.xpose.msra.mxu0 0.0
    %838 = vmatprep.subr.mxu0 0.0
    %839 = vmatpush1.xpose.msra.mxu0 0.0
    %840 = vmatprep.subr.mxu0 0.0
    %841 = vmatpush1.xpose.msra.mxu0 0.0
    %842 = vmatprep.subr.mxu0 0.0
    %843 = vmatpush1.xpose.msra.mxu0 0.0
    %844 = vmatprep.mubr.f32.mxu0 0.0
    %845 = vmatmul.mubr.f32.gmra.mrb[0].mxu0 %v776
    %v846 = vpop.f32.mrb[0].mxu0
    %v847 = vadd.f32 0.0, %v846
    %v848 = vpop.f32.mrb[0].mxu0
    %849 = vdwg.mxu0
    %v850 = vmul.f32 %v302, 0.35355338
    %v851 = vmul.f32 %v380, 0.35355338
    %v852 = vmul.f32 %v458, 0.35355338
    %v853 = vmul.f32 %v536, 0.35355338
    %v854 = vmul.f32 %v613, 0.35355338
    %v855 = vmul.f32 %v691, 0.35355338
    %v856 = vmul.f32 %v769, 0.35355338
    %v857 = vmul.f32 %v847, 0.35355338
    %v858 = vadd.f32 %v850, %v222
    %v859 = vadd.f32 %v851, %v222
    %v860 = vadd.f32 %v852, %v222
    %v861 = vadd.f32 %v853, %v222
    %v862 = vadd.f32 %v854, %v226
    %v863 = vadd.f32 %v855, %v226
    %v864 = vadd.f32 %v856, %v226
    %v865 = vadd.f32 %v857, %v226
    %v866 = vmul.f32 %v858, 1.442695
    %v867 = vpow.pop %v866
    %v868 = vmul.f32 %v859, 1.442695
    %v869 = vpow.pop %v868
    %v870 = vmul.f32 %v860, 1.442695
    %v871 = vpow.pop %v870
    %v872 = vmul.f32 %v861, 1.442695
    %v873 = vpow.pop %v872
    %v874 = vmul.f32 %v862, 1.442695
    %v875 = vpow.pop %v874
    %v876 = vmul.f32 %v863, 1.442695
    %v877 = vpow.pop %v876
    %v878 = vmul.f32 %v864, 1.442695
    %v879 = vpow.pop %v878
    %v880 = vmul.f32 %v865, 1.442695
    %v881 = vpow.pop %v880
    %v882 = vsel %vm230, %v867, 0.0
    %883 = vadd.xlane.f32.xlu0 %v882
    %v884 = vpop.xlane.xlu0 %883
    %v885 = vsel %vm230, %v869, 0.0
    %886 = vadd.xlane.f32.xlu0 %v885
    %v887 = vpop.xlane.xlu0 %886
    %v888 = vsel %vm230, %v871, 0.0
    %889 = vadd.xlane.f32.xlu0 %v888
    %v890 = vpop.xlane.xlu0 %889
    %v891 = vsel %vm230, %v873, 0.0
    %892 = vadd.xlane.f32.xlu0 %v891
    %v893 = vpop.xlane.xlu0 %892
    %v894 = vsel %vm230, %v875, 0.0
    %895 = vadd.xlane.f32.xlu0 %v894
    %v896 = vpop.xlane.xlu0 %895
    %v897 = vsel %vm230, %v877, 0.0
    %898 = vadd.xlane.f32.xlu0 %v897
    %v899 = vpop.xlane.xlu0 %898
    %v900 = vsel %vm230, %v879, 0.0
    %901 = vadd.xlane.f32.xlu0 %v900
    %v902 = vpop.xlane.xlu0 %901
    %v903 = vsel %vm230, %v881, 0.0
    %904 = vadd.xlane.f32.xlu0 %v903
    %v905 = vpop.xlane.xlu0 %904
    %v906 = vrcp.pop %v884
    %v907 = vrcp.pop %v887
    %v908 = vrcp.pop %v890
    %v909 = vrcp.pop %v893
    %v910 = vrcp.pop %v896
    %v911 = vrcp.pop %v899
    %v912 = vrcp.pop %v902
    %v913 = vrcp.pop %v905
    %v914 = vmul.f32 %v867, %v906
    %v915 = vmul.f32 %v869, %v907
    %v916 = vmul.f32 %v871, %v908
    %v917 = vmul.f32 %v873, %v909
    %v918 = vmul.f32 %v875, %v910
    %v919 = vmul.f32 %v877, %v911
    %v920 = vmul.f32 %v879, %v912
    %v921 = vmul.f32 %v881, %v913
    %922 = vrot.lane.b32.xlu0 %v208, 64
    %v923 = vpop.permute.xlu0 %922
    %v926 = vsel %vm230, %v914, 0
    %928 = vmatprep.subr.mxu0 0.0
    %929 = vmatpush1.msra.mxu0 %v923
    %930 = vmatprep.subr.mxu0 0.0
    %931 = vmatpush1.msra.mxu0 0.0
    %932 = vmatprep.subr.mxu0 0.0
    %933 = vmatpush1.msra.mxu0 0.0
    %934 = vmatprep.subr.mxu0 0.0
    %935 = vmatpush1.msra.mxu0 0.0
    %936 = vmatprep.subr.mxu0 0.0
    %937 = vmatpush1.msra.mxu0 0.0
    %938 = vmatprep.subr.mxu0 0.0
    %939 = vmatpush1.msra.mxu0 0.0
    %940 = vmatprep.subr.mxu0 0.0
    %941 = vmatpush1.msra.mxu0 0.0
    %942 = vmatprep.subr.mxu0 0.0
    %943 = vmatpush1.msra.mxu0 0.0
    %944 = vmatprep.subr.mxu0 0.0
    %945 = vmatpush1.msra.mxu0 0.0
    %946 = vmatprep.subr.mxu0 0.0
    %947 = vmatpush1.msra.mxu0 0.0
    %948 = vmatprep.subr.mxu0 0.0
    %949 = vmatpush1.msra.mxu0 0.0
    %950 = vmatprep.subr.mxu0 0.0
    %951 = vmatpush1.msra.mxu0 0.0
    %952 = vmatprep.subr.mxu0 0.0
    %953 = vmatpush1.msra.mxu0 0.0
    %954 = vmatprep.subr.mxu0 0.0
    %955 = vmatpush1.msra.mxu0 0.0
    %956 = vmatprep.subr.mxu0 0.0
    %957 = vmatpush1.msra.mxu0 0.0
    %958 = vmatprep.subr.mxu0 0.0
    %959 = vmatpush1.msra.mxu0 0.0
    %960 = vmatprep.subr.mxu0 0.0
    %961 = vmatpush1.msra.mxu0 0.0
    %962 = vmatprep.subr.mxu0 0.0
    %963 = vmatpush1.msra.mxu0 0.0
    %964 = vmatprep.subr.mxu0 0.0
    %965 = vmatpush1.msra.mxu0 0.0
    %966 = vmatprep.subr.mxu0 0.0
    %967 = vmatpush1.msra.mxu0 0.0
    %968 = vmatprep.subr.mxu0 0.0
    %969 = vmatpush1.msra.mxu0 0.0
    %970 = vmatprep.subr.mxu0 0.0
    %971 = vmatpush1.msra.mxu0 0.0
    %972 = vmatprep.subr.mxu0 0.0
    %973 = vmatpush1.msra.mxu0 0.0
    %974 = vmatprep.subr.mxu0 0.0
    %975 = vmatpush1.msra.mxu0 0.0
    %976 = vmatprep.subr.mxu0 0.0
    %977 = vmatpush1.msra.mxu0 0.0
    %978 = vmatprep.subr.mxu0 0.0
    %979 = vmatpush1.msra.mxu0 0.0
    %980 = vmatprep.subr.mxu0 0.0
    %981 = vmatpush1.msra.mxu0 0.0
    %982 = vmatprep.subr.mxu0 0.0
    %983 = vmatpush1.msra.mxu0 0.0
    %984 = vmatprep.subr.mxu0 0.0
    %985 = vmatpush1.msra.mxu0 0.0
    %986 = vmatprep.subr.mxu0 0.0
    %987 = vmatpush1.msra.mxu0 0.0
    %988 = vmatprep.subr.mxu0 0.0
    %989 = vmatpush1.msra.mxu0 0.0
    %990 = vmatprep.subr.mxu0 0.0
    %991 = vmatpush1.msra.mxu0 0.0
    %992 = vmatprep.mubr.f32.mxu0 0.0
    %993 = vmatmul.mubr.f32.gmra.mrb[0].mxu0 %v926
    %v994 = vpop.f32.mrb[0].mxu0
    %v995 = vadd.f32 0.0, %v994
    %v996 = vpop.f32.mrb[0].mxu0
    %997 = vdwg.mxu0
    %998 = vrot.lane.b32.xlu0 %v208, 56
    %v999 = vpop.permute.xlu0 %998
    %v1002 = vsel %vm230, %v915, 0
    %1004 = vmatprep.subr.mxu0 0.0
    %1005 = vmatpush1.msra.mxu0 %v999
    %1006 = vmatprep.subr.mxu0 0.0
    %1007 = vmatpush1.msra.mxu0 0.0
    %1008 = vmatprep.subr.mxu0 0.0
    %1009 = vmatpush1.msra.mxu0 0.0
    %1010 = vmatprep.subr.mxu0 0.0
    %1011 = vmatpush1.msra.mxu0 0.0
    %1012 = vmatprep.subr.mxu0 0.0
    %1013 = vmatpush1.msra.mxu0 0.0
    %1014 = vmatprep.subr.mxu0 0.0
    %1015 = vmatpush1.msra.mxu0 0.0
    %1016 = vmatprep.subr.mxu0 0.0
    %1017 = vmatpush1.msra.mxu0 0.0
    %1018 = vmatprep.subr.mxu0 0.0
    %1019 = vmatpush1.msra.mxu0 0.0
    %1020 = vmatprep.subr.mxu0 0.0
    %1021 = vmatpush1.msra.mxu0 0.0
    %1022 = vmatprep.subr.mxu0 0.0
    %1023 = vmatpush1.msra.mxu0 0.0
    %1024 = vmatprep.subr.mxu0 0.0
    %1025 = vmatpush1.msra.mxu0 0.0
    %1026 = vmatprep.subr.mxu0 0.0
    %1027 = vmatpush1.msra.mxu0 0.0
    %1028 = vmatprep.subr.mxu0 0.0
    %1029 = vmatpush1.msra.mxu0 0.0
    %1030 = vmatprep.subr.mxu0 0.0
    %1031 = vmatpush1.msra.mxu0 0.0
    %1032 = vmatprep.subr.mxu0 0.0
    %1033 = vmatpush1.msra.mxu0 0.0
    %1034 = vmatprep.subr.mxu0 0.0
    %1035 = vmatpush1.msra.mxu0 0.0
    %1036 = vmatprep.subr.mxu0 0.0
    %1037 = vmatpush1.msra.mxu0 0.0
    %1038 = vmatprep.subr.mxu0 0.0
    %1039 = vmatpush1.msra.mxu0 0.0
    %1040 = vmatprep.subr.mxu0 0.0
    %1041 = vmatpush1.msra.mxu0 0.0
    %1042 = vmatprep.subr.mxu0 0.0
    %1043 = vmatpush1.msra.mxu0 0.0
    %1044 = vmatprep.subr.mxu0 0.0
    %1045 = vmatpush1.msra.mxu0 0.0
    %1046 = vmatprep.subr.mxu0 0.0
    %1047 = vmatpush1.msra.mxu0 0.0
    %1048 = vmatprep.subr.mxu0 0.0
    %1049 = vmatpush1.msra.mxu0 0.0
    %1050 = vmatprep.subr.mxu0 0.0
    %1051 = vmatpush1.msra.mxu0 0.0
    %1052 = vmatprep.subr.mxu0 0.0
    %1053 = vmatpush1.msra.mxu0 0.0
    %1054 = vmatprep.subr.mxu0 0.0
    %1055 = vmatpush1.msra.mxu0 0.0
    %1056 = vmatprep.subr.mxu0 0.0
    %1057 = vmatpush1.msra.mxu0 0.0
    %1058 = vmatprep.subr.mxu0 0.0
    %1059 = vmatpush1.msra.mxu0 0.0
    %1060 = vmatprep.subr.mxu0 0.0
    %1061 = vmatpush1.msra.mxu0 0.0
    %1062 = vmatprep.subr.mxu0 0.0
    %1063 = vmatpush1.msra.mxu0 0.0
    %1064 = vmatprep.subr.mxu0 0.0
    %1065 = vmatpush1.msra.mxu0 0.0
    %1066 = vmatprep.subr.mxu0 0.0
    %1067 = vmatpush1.msra.mxu0 0.0
    %1068 = vmatprep.mubr.f32.mxu0 0.0
    %1069 = vmatmul.mubr.f32.gmra.mrb[0].mxu0 %v1002
    %v1070 = vpop.f32.mrb[0].mxu0
    %v1071 = vadd.f32 0.0, %v1070
    %v1072 = vpop.f32.mrb[0].mxu0
    %1073 = vdwg.mxu0
    %1074 = vrot.lane.b32.xlu0 %v208, 48
    %v1075 = vpop.permute.xlu0 %1074
    %v1078 = vsel %vm230, %v916, 0
    %1080 = vmatprep.subr.mxu0 0.0
    %1081 = vmatpush1.msra.mxu0 %v1075
    %1082 = vmatprep.subr.mxu0 0.0
    %1083 = vmatpush1.msra.mxu0 0.0
    %1084 = vmatprep.subr.mxu0 0.0
    %1085 = vmatpush1.msra.mxu0 0.0
    %1086 = vmatprep.subr.mxu0 0.0
    %1087 = vmatpush1.msra.mxu0 0.0
    %1088 = vmatprep.subr.mxu0 0.0
    %1089 = vmatpush1.msra.mxu0 0.0
    %1090 = vmatprep.subr.mxu0 0.0
    %1091 = vmatpush1.msra.mxu0 0.0
    %1092 = vmatprep.subr.mxu0 0.0
    %1093 = vmatpush1.msra.mxu0 0.0
    %1094 = vmatprep.subr.mxu0 0.0
    %1095 = vmatpush1.msra.mxu0 0.0
    %1096 = vmatprep.subr.mxu0 0.0
    %1097 = vmatpush1.msra.mxu0 0.0
    %1098 = vmatprep.subr.mxu0 0.0
    %1099 = vmatpush1.msra.mxu0 0.0
    %1100 = vmatprep.subr.mxu0 0.0
    %1101 = vmatpush1.msra.mxu0 0.0
    %1102 = vmatprep.subr.mxu0 0.0
    %1103 = vmatpush1.msra.mxu0 0.0
    %1104 = vmatprep.subr.mxu0 0.0
    %1105 = vmatpush1.msra.mxu0 0.0
    %1106 = vmatprep.subr.mxu0 0.0
    %1107 = vmatpush1.msra.mxu0 0.0
    %1108 = vmatprep.subr.mxu0 0.0
    %1109 = vmatpush1.msra.mxu0 0.0
    %1110 = vmatprep.subr.mxu0 0.0
    %1111 = vmatpush1.msra.mxu0 0.0
    %1112 = vmatprep.subr.mxu0 0.0
    %1113 = vmatpush1.msra.mxu0 0.0
    %1114 = vmatprep.subr.mxu0 0.0
    %1115 = vmatpush1.msra.mxu0 0.0
    %1116 = vmatprep.subr.mxu0 0.0
    %1117 = vmatpush1.msra.mxu0 0.0
    %1118 = vmatprep.subr.mxu0 0.0
    %1119 = vmatpush1.msra.mxu0 0.0
    %1120 = vmatprep.subr.mxu0 0.0
    %1121 = vmatpush1.msra.mxu0 0.0
    %1122 = vmatprep.subr.mxu0 0.0
    %1123 = vmatpush1.msra.mxu0 0.0
    %1124 = vmatprep.subr.mxu0 0.0
    %1125 = vmatpush1.msra.mxu0 0.0
    %1126 = vmatprep.subr.mxu0 0.0
    %1127 = vmatpush1.msra.mxu0 0.0
    %1128 = vmatprep.subr.mxu0 0.0
    %1129 = vmatpush1.msra.mxu0 0.0
    %1130 = vmatprep.subr.mxu0 0.0
    %1131 = vmatpush1.msra.mxu0 0.0
    %1132 = vmatprep.subr.mxu0 0.0
    %1133 = vmatpush1.msra.mxu0 0.0
    %1134 = vmatprep.subr.mxu0 0.0
    %1135 = vmatpush1.msra.mxu0 0.0
    %1136 = vmatprep.subr.mxu0 0.0
    %1137 = vmatpush1.msra.mxu0 0.0
    %1138 = vmatprep.subr.mxu0 0.0
    %1139 = vmatpush1.msra.mxu0 0.0
    %1140 = vmatprep.subr.mxu0 0.0
    %1141 = vmatpush1.msra.mxu0 0.0
    %1142 = vmatprep.subr.mxu0 0.0
    %1143 = vmatpush1.msra.mxu0 0.0
    %1144 = vmatprep.mubr.f32.mxu0 0.0
    %1145 = vmatmul.mubr.f32.gmra.mrb[0].mxu0 %v1078
    %v1146 = vpop.f32.mrb[0].mxu0
    %v1147 = vadd.f32 0.0, %v1146
    %v1148 = vpop.f32.mrb[0].mxu0
    %1149 = vdwg.mxu0
    %1150 = vrot.lane.b32.xlu0 %v208, 40
    %v1151 = vpop.permute.xlu0 %1150
    %v1154 = vsel %vm230, %v917, 0
    %1156 = vmatprep.subr.mxu0 0.0
    %1157 = vmatpush1.msra.mxu0 %v1151
    %1158 = vmatprep.subr.mxu0 0.0
    %1159 = vmatpush1.msra.mxu0 0.0
    %1160 = vmatprep.subr.mxu0 0.0
    %1161 = vmatpush1.msra.mxu0 0.0
    %1162 = vmatprep.subr.mxu0 0.0
    %1163 = vmatpush1.msra.mxu0 0.0
    %1164 = vmatprep.subr.mxu0 0.0
    %1165 = vmatpush1.msra.mxu0 0.0
    %1166 = vmatprep.subr.mxu0 0.0
    %1167 = vmatpush1.msra.mxu0 0.0
    %1168 = vmatprep.subr.mxu0 0.0
    %1169 = vmatpush1.msra.mxu0 0.0
    %1170 = vmatprep.subr.mxu0 0.0
    %1171 = vmatpush1.msra.mxu0 0.0
    %1172 = vmatprep.subr.mxu0 0.0
    %1173 = vmatpush1.msra.mxu0 0.0
    %1174 = vmatprep.subr.mxu0 0.0
    %1175 = vmatpush1.msra.mxu0 0.0
    %1176 = vmatprep.subr.mxu0 0.0
    %1177 = vmatpush1.msra.mxu0 0.0
    %1178 = vmatprep.subr.mxu0 0.0
    %1179 = vmatpush1.msra.mxu0 0.0
    %1180 = vmatprep.subr.mxu0 0.0
    %1181 = vmatpush1.msra.mxu0 0.0
    %1182 = vmatprep.subr.mxu0 0.0
    %1183 = vmatpush1.msra.mxu0 0.0
    %1184 = vmatprep.subr.mxu0 0.0
    %1185 = vmatpush1.msra.mxu0 0.0
    %1186 = vmatprep.subr.mxu0 0.0
    %1187 = vmatpush1.msra.mxu0 0.0
    %1188 = vmatprep.subr.mxu0 0.0
    %1189 = vmatpush1.msra.mxu0 0.0
    %1190 = vmatprep.subr.mxu0 0.0
    %1191 = vmatpush1.msra.mxu0 0.0
    %1192 = vmatprep.subr.mxu0 0.0
    %1193 = vmatpush1.msra.mxu0 0.0
    %1194 = vmatprep.subr.mxu0 0.0
    %1195 = vmatpush1.msra.mxu0 0.0
    %1196 = vmatprep.subr.mxu0 0.0
    %1197 = vmatpush1.msra.mxu0 0.0
    %1198 = vmatprep.subr.mxu0 0.0
    %1199 = vmatpush1.msra.mxu0 0.0
    %1200 = vmatprep.subr.mxu0 0.0
    %1201 = vmatpush1.msra.mxu0 0.0
    %1202 = vmatprep.subr.mxu0 0.0
    %1203 = vmatpush1.msra.mxu0 0.0
    %1204 = vmatprep.subr.mxu0 0.0
    %1205 = vmatpush1.msra.mxu0 0.0
    %1206 = vmatprep.subr.mxu0 0.0
    %1207 = vmatpush1.msra.mxu0 0.0
    %1208 = vmatprep.subr.mxu0 0.0
    %1209 = vmatpush1.msra.mxu0 0.0
    %1210 = vmatprep.subr.mxu0 0.0
    %1211 = vmatpush1.msra.mxu0 0.0
    %1212 = vmatprep.subr.mxu0 0.0
    %1213 = vmatpush1.msra.mxu0 0.0
    %1214 = vmatprep.subr.mxu0 0.0
    %1215 = vmatpush1.msra.mxu0 0.0
    %1216 = vmatprep.subr.mxu0 0.0
    %1217 = vmatpush1.msra.mxu0 0.0
    %1218 = vmatprep.subr.mxu0 0.0
    %1219 = vmatpush1.msra.mxu0 0.0
    %1220 = vmatprep.mubr.f32.mxu0 0.0
    %1221 = vmatmul.mubr.f32.gmra.mrb[0].mxu0 %v1154
    %v1222 = vpop.f32.mrb[0].mxu0
    %v1223 = vadd.f32 0.0, %v1222
    %v1224 = vpop.f32.mrb[0].mxu0
    %1225 = vdwg.mxu0
    %1227 = vrot.lane.b32.xlu0 %v1071, 8
    %v1228 = vpop.permute.xlu0 %1227
    %1231 = vrot.lane.b32.xlu0 %v1147, 16
    %v1232 = vpop.permute.xlu0 %1231
    %1235 = vrot.lane.b32.xlu0 %v1223, 24
    %v1236 = vpop.permute.xlu0 %1235
    %v1238 = vsel %vm230, %v995, %v1228
    %vm1239 = vcmask 130048
    %v1240 = vsel %vm1239, %v1238, %v1232
    %vm1241 = vcmask 195584
    %v1242 = vsel %vm1241, %v1240, %v1236
    %1243 = vrot.lane.b32.xlu0 %v213, 64
    %v1244 = vpop.permute.xlu0 %1243
    %v1247 = vsel %vm230, %v918, 0
    %1249 = vmatprep.subr.mxu0 0.0
    %1250 = vmatpush1.msra.mxu0 %v1244
    %1251 = vmatprep.subr.mxu0 0.0
    %1252 = vmatpush1.msra.mxu0 0.0
    %1253 = vmatprep.subr.mxu0 0.0
    %1254 = vmatpush1.msra.mxu0 0.0
    %1255 = vmatprep.subr.mxu0 0.0
    %1256 = vmatpush1.msra.mxu0 0.0
    %1257 = vmatprep.subr.mxu0 0.0
    %1258 = vmatpush1.msra.mxu0 0.0
    %1259 = vmatprep.subr.mxu0 0.0
    %1260 = vmatpush1.msra.mxu0 0.0
    %1261 = vmatprep.subr.mxu0 0.0
    %1262 = vmatpush1.msra.mxu0 0.0
    %1263 = vmatprep.subr.mxu0 0.0
    %1264 = vmatpush1.msra.mxu0 0.0
    %1265 = vmatprep.subr.mxu0 0.0
    %1266 = vmatpush1.msra.mxu0 0.0
    %1267 = vmatprep.subr.mxu0 0.0
    %1268 = vmatpush1.msra.mxu0 0.0
    %1269 = vmatprep.subr.mxu0 0.0
    %1270 = vmatpush1.msra.mxu0 0.0
    %1271 = vmatprep.subr.mxu0 0.0
    %1272 = vmatpush1.msra.mxu0 0.0
    %1273 = vmatprep.subr.mxu0 0.0
    %1274 = vmatpush1.msra.mxu0 0.0
    %1275 = vmatprep.subr.mxu0 0.0
    %1276 = vmatpush1.msra.mxu0 0.0
    %1277 = vmatprep.subr.mxu0 0.0
    %1278 = vmatpush1.msra.mxu0 0.0
    %1279 = vmatprep.subr.mxu0 0.0
    %1280 = vmatpush1.msra.mxu0 0.0
    %1281 = vmatprep.subr.mxu0 0.0
    %1282 = vmatpush1.msra.mxu0 0.0
    %1283 = vmatprep.subr.mxu0 0.0
    %1284 = vmatpush1.msra.mxu0 0.0
    %1285 = vmatprep.subr.mxu0 0.0
    %1286 = vmatpush1.msra.mxu0 0.0
    %1287 = vmatprep.subr.mxu0 0.0
    %1288 = vmatpush1.msra.mxu0 0.0
    %1289 = vmatprep.subr.mxu0 0.0
    %1290 = vmatpush1.msra.mxu0 0.0
    %1291 = vmatprep.subr.mxu0 0.0
    %1292 = vmatpush1.msra.mxu0 0.0
    %1293 = vmatprep.subr.mxu0 0.0
    %1294 = vmatpush1.msra.mxu0 0.0
    %1295 = vmatprep.subr.mxu0 0.0
    %1296 = vmatpush1.msra.mxu0 0.0
    %1297 = vmatprep.subr.mxu0 0.0
    %1298 = vmatpush1.msra.mxu0 0.0
    %1299 = vmatprep.subr.mxu0 0.0
    %1300 = vmatpush1.msra.mxu0 0.0
    %1301 = vmatprep.subr.mxu0 0.0
    %1302 = vmatpush1.msra.mxu0 0.0
    %1303 = vmatprep.subr.mxu0 0.0
    %1304 = vmatpush1.msra.mxu0 0.0
    %1305 = vmatprep.subr.mxu0 0.0
    %1306 = vmatpush1.msra.mxu0 0.0
    %1307 = vmatprep.subr.mxu0 0.0
    %1308 = vmatpush1.msra.mxu0 0.0
    %1309 = vmatprep.subr.mxu0 0.0
    %1310 = vmatpush1.msra.mxu0 0.0
    %1311 = vmatprep.subr.mxu0 0.0
    %1312 = vmatpush1.msra.mxu0 0.0
    %1313 = vmatprep.mubr.f32.mxu0 0.0
    %1314 = vmatmul.mubr.f32.gmra.mrb[0].mxu0 %v1247
    %v1315 = vpop.f32.mrb[0].mxu0
    %v1316 = vadd.f32 0.0, %v1315
    %v1317 = vpop.f32.mrb[0].mxu0
    %1318 = vdwg.mxu0
    %1319 = vrot.lane.b32.xlu0 %v213, 56
    %v1320 = vpop.permute.xlu0 %1319
    %v1323 = vsel %vm230, %v919, 0
    %1325 = vmatprep.subr.mxu0 0.0
    %1326 = vmatpush1.msra.mxu0 %v1320
    %1327 = vmatprep.subr.mxu0 0.0
    %1328 = vmatpush1.msra.mxu0 0.0
    %1329 = vmatprep.subr.mxu0 0.0
    %1330 = vmatpush1.msra.mxu0 0.0
    %1331 = vmatprep.subr.mxu0 0.0
    %1332 = vmatpush1.msra.mxu0 0.0
    %1333 = vmatprep.subr.mxu0 0.0
    %1334 = vmatpush1.msra.mxu0 0.0
    %1335 = vmatprep.subr.mxu0 0.0
    %1336 = vmatpush1.msra.mxu0 0.0
    %1337 = vmatprep.subr.mxu0 0.0
    %1338 = vmatpush1.msra.mxu0 0.0
    %1339 = vmatprep.subr.mxu0 0.0
    %1340 = vmatpush1.msra.mxu0 0.0
    %1341 = vmatprep.subr.mxu0 0.0
    %1342 = vmatpush1.msra.mxu0 0.0
    %1343 = vmatprep.subr.mxu0 0.0
    %1344 = vmatpush1.msra.mxu0 0.0
    %1345 = vmatprep.subr.mxu0 0.0
    %1346 = vmatpush1.msra.mxu0 0.0
    %1347 = vmatprep.subr.mxu0 0.0
    %1348 = vmatpush1.msra.mxu0 0.0
    %1349 = vmatprep.subr.mxu0 0.0
    %1350 = vmatpush1.msra.mxu0 0.0
    %1351 = vmatprep.subr.mxu0 0.0
    %1352 = vmatpush1.msra.mxu0 0.0
    %1353 = vmatprep.subr.mxu0 0.0
    %1354 = vmatpush1.msra.mxu0 0.0
    %1355 = vmatprep.subr.mxu0 0.0
    %1356 = vmatpush1.msra.mxu0 0.0
    %1357 = vmatprep.subr.mxu0 0.0
    %1358 = vmatpush1.msra.mxu0 0.0
    %1359 = vmatprep.subr.mxu0 0.0
    %1360 = vmatpush1.msra.mxu0 0.0
    %1361 = vmatprep.subr.mxu0 0.0
    %1362 = vmatpush1.msra.mxu0 0.0
    %1363 = vmatprep.subr.mxu0 0.0
    %1364 = vmatpush1.msra.mxu0 0.0
    %1365 = vmatprep.subr.mxu0 0.0
    %1366 = vmatpush1.msra.mxu0 0.0
    %1367 = vmatprep.subr.mxu0 0.0
    %1368 = vmatpush1.msra.mxu0 0.0
    %1369 = vmatprep.subr.mxu0 0.0
    %1370 = vmatpush1.msra.mxu0 0.0
    %1371 = vmatprep.subr.mxu0 0.0
    %1372 = vmatpush1.msra.mxu0 0.0
    %1373 = vmatprep.subr.mxu0 0.0
    %1374 = vmatpush1.msra.mxu0 0.0
    %1375 = vmatprep.subr.mxu0 0.0
    %1376 = vmatpush1.msra.mxu0 0.0
    %1377 = vmatprep.subr.mxu0 0.0
    %1378 = vmatpush1.msra.mxu0 0.0
    %1379 = vmatprep.subr.mxu0 0.0
    %1380 = vmatpush1.msra.mxu0 0.0
    %1381 = vmatprep.subr.mxu0 0.0
    %1382 = vmatpush1.msra.mxu0 0.0
    %1383 = vmatprep.subr.mxu0 0.0
    %1384 = vmatpush1.msra.mxu0 0.0
    %1385 = vmatprep.subr.mxu0 0.0
    %1386 = vmatpush1.msra.mxu0 0.0
    %1387 = vmatprep.subr.mxu0 0.0
    %1388 = vmatpush1.msra.mxu0 0.0
    %1389 = vmatprep.mubr.f32.mxu0 0.0
    %1390 = vmatmul.mubr.f32.gmra.mrb[0].mxu0 %v1323
    %v1391 = vpop.f32.mrb[0].mxu0
    %v1392 = vadd.f32 0.0, %v1391
    %v1393 = vpop.f32.mrb[0].mxu0
    %1394 = vdwg.mxu0
    %1395 = vrot.lane.b32.xlu0 %v213, 48
    %v1396 = vpop.permute.xlu0 %1395
    %v1399 = vsel %vm230, %v920, 0
    %1401 = vmatprep.subr.mxu0 0.0
    %1402 = vmatpush1.msra.mxu0 %v1396
    %1403 = vmatprep.subr.mxu0 0.0
    %1404 = vmatpush1.msra.mxu0 0.0
    %1405 = vmatprep.subr.mxu0 0.0
    %1406 = vmatpush1.msra.mxu0 0.0
    %1407 = vmatprep.subr.mxu0 0.0
    %1408 = vmatpush1.msra.mxu0 0.0
    %1409 = vmatprep.subr.mxu0 0.0
    %1410 = vmatpush1.msra.mxu0 0.0
    %1411 = vmatprep.subr.mxu0 0.0
    %1412 = vmatpush1.msra.mxu0 0.0
    %1413 = vmatprep.subr.mxu0 0.0
    %1414 = vmatpush1.msra.mxu0 0.0
    %1415 = vmatprep.subr.mxu0 0.0
    %1416 = vmatpush1.msra.mxu0 0.0
    %1417 = vmatprep.subr.mxu0 0.0
    %1418 = vmatpush1.msra.mxu0 0.0
    %1419 = vmatprep.subr.mxu0 0.0
    %1420 = vmatpush1.msra.mxu0 0.0
    %1421 = vmatprep.subr.mxu0 0.0
    %1422 = vmatpush1.msra.mxu0 0.0
    %1423 = vmatprep.subr.mxu0 0.0
    %1424 = vmatpush1.msra.mxu0 0.0
    %1425 = vmatprep.subr.mxu0 0.0
    %1426 = vmatpush1.msra.mxu0 0.0
    %1427 = vmatprep.subr.mxu0 0.0
    %1428 = vmatpush1.msra.mxu0 0.0
    %1429 = vmatprep.subr.mxu0 0.0
    %1430 = vmatpush1.msra.mxu0 0.0
    %1431 = vmatprep.subr.mxu0 0.0
    %1432 = vmatpush1.msra.mxu0 0.0
    %1433 = vmatprep.subr.mxu0 0.0
    %1434 = vmatpush1.msra.mxu0 0.0
    %1435 = vmatprep.subr.mxu0 0.0
    %1436 = vmatpush1.msra.mxu0 0.0
    %1437 = vmatprep.subr.mxu0 0.0
    %1438 = vmatpush1.msra.mxu0 0.0
    %1439 = vmatprep.subr.mxu0 0.0
    %1440 = vmatpush1.msra.mxu0 0.0
    %1441 = vmatprep.subr.mxu0 0.0
    %1442 = vmatpush1.msra.mxu0 0.0
    %1443 = vmatprep.subr.mxu0 0.0
    %1444 = vmatpush1.msra.mxu0 0.0
    %1445 = vmatprep.subr.mxu0 0.0
    %1446 = vmatpush1.msra.mxu0 0.0
    %1447 = vmatprep.subr.mxu0 0.0
    %1448 = vmatpush1.msra.mxu0 0.0
    %1449 = vmatprep.subr.mxu0 0.0
    %1450 = vmatpush1.msra.mxu0 0.0
    %1451 = vmatprep.subr.mxu0 0.0
    %1452 = vmatpush1.msra.mxu0 0.0
    %1453 = vmatprep.subr.mxu0 0.0
    %1454 = vmatpush1.msra.mxu0 0.0
    %1455 = vmatprep.subr.mxu0 0.0
    %1456 = vmatpush1.msra.mxu0 0.0
    %1457 = vmatprep.subr.mxu0 0.0
    %1458 = vmatpush1.msra.mxu0 0.0
    %1459 = vmatprep.subr.mxu0 0.0
    %1460 = vmatpush1.msra.mxu0 0.0
    %1461 = vmatprep.subr.mxu0 0.0
    %1462 = vmatpush1.msra.mxu0 0.0
    %1463 = vmatprep.subr.mxu0 0.0
    %1464 = vmatpush1.msra.mxu0 0.0
    %1465 = vmatprep.mubr.f32.mxu0 0.0
    %1466 = vmatmul.mubr.f32.gmra.mrb[0].mxu0 %v1399
    %v1467 = vpop.f32.mrb[0].mxu0
    %v1468 = vadd.f32 0.0, %v1467
    %v1469 = vpop.f32.mrb[0].mxu0
    %1470 = vdwg.mxu0
    %1471 = vrot.lane.b32.xlu0 %v213, 40
    %v1472 = vpop.permute.xlu0 %1471
    %v1475 = vsel %vm230, %v921, 0
    %1477 = vmatprep.subr.mxu0 0.0
    %1478 = vmatpush1.msra.mxu0 %v1472
    %1479 = vmatprep.subr.mxu0 0.0
    %1480 = vmatpush1.msra.mxu0 0.0
    %1481 = vmatprep.subr.mxu0 0.0
    %1482 = vmatpush1.msra.mxu0 0.0
    %1483 = vmatprep.subr.mxu0 0.0
    %1484 = vmatpush1.msra.mxu0 0.0
    %1485 = vmatprep.subr.mxu0 0.0
    %1486 = vmatpush1.msra.mxu0 0.0
    %1487 = vmatprep.subr.mxu0 0.0
    %1488 = vmatpush1.msra.mxu0 0.0
    %1489 = vmatprep.subr.mxu0 0.0
    %1490 = vmatpush1.msra.mxu0 0.0
    %1491 = vmatprep.subr.mxu0 0.0
    %1492 = vmatpush1.msra.mxu0 0.0
    %1493 = vmatprep.subr.mxu0 0.0
    %1494 = vmatpush1.msra.mxu0 0.0
    %1495 = vmatprep.subr.mxu0 0.0
    %1496 = vmatpush1.msra.mxu0 0.0
    %1497 = vmatprep.subr.mxu0 0.0
    %1498 = vmatpush1.msra.mxu0 0.0
    %1499 = vmatprep.subr.mxu0 0.0
    %1500 = vmatpush1.msra.mxu0 0.0
    %1501 = vmatprep.subr.mxu0 0.0
    %1502 = vmatpush1.msra.mxu0 0.0
    %1503 = vmatprep.subr.mxu0 0.0
    %1504 = vmatpush1.msra.mxu0 0.0
    %1505 = vmatprep.subr.mxu0 0.0
    %1506 = vmatpush1.msra.mxu0 0.0
    %1507 = vmatprep.subr.mxu0 0.0
    %1508 = vmatpush1.msra.mxu0 0.0
    %1509 = vmatprep.subr.mxu0 0.0
    %1510 = vmatpush1.msra.mxu0 0.0
    %1511 = vmatprep.subr.mxu0 0.0
    %1512 = vmatpush1.msra.mxu0 0.0
    %1513 = vmatprep.subr.mxu0 0.0
    %1514 = vmatpush1.msra.mxu0 0.0
    %1515 = vmatprep.subr.mxu0 0.0
    %1516 = vmatpush1.msra.mxu0 0.0
    %1517 = vmatprep.subr.mxu0 0.0
    %1518 = vmatpush1.msra.mxu0 0.0
    %1519 = vmatprep.subr.mxu0 0.0
    %1520 = vmatpush1.msra.mxu0 0.0
    %1521 = vmatprep.subr.mxu0 0.0
    %1522 = vmatpush1.msra.mxu0 0.0
    %1523 = vmatprep.subr.mxu0 0.0
    %1524 = vmatpush1.msra.mxu0 0.0
    %1525 = vmatprep.subr.mxu0 0.0
    %1526 = vmatpush1.msra.mxu0 0.0
    %1527 = vmatprep.subr.mxu0 0.0
    %1528 = vmatpush1.msra.mxu0 0.0
    %1529 = vmatprep.subr.mxu0 0.0
    %1530 = vmatpush1.msra.mxu0 0.0
    %1531 = vmatprep.subr.mxu0 0.0
    %1532 = vmatpush1.msra.mxu0 0.0
    %1533 = vmatprep.subr.mxu0 0.0
    %1534 = vmatpush1.msra.mxu0 0.0
    %1535 = vmatprep.subr.mxu0 0.0
    %1536 = vmatpush1.msra.mxu0 0.0
    %1537 = vmatprep.subr.mxu0 0.0
    %1538 = vmatpush1.msra.mxu0 0.0
    %1539 = vmatprep.subr.mxu0 0.0
    %1540 = vmatpush1.msra.mxu0 0.0
    %1541 = vmatprep.mubr.f32.mxu0 0.0
    %1542 = vmatmul.mubr.f32.gmra.mrb[0].mxu0 %v1475
    %v1543 = vpop.f32.mrb[0].mxu0
    %v1544 = vadd.f32 0.0, %v1543
    %v1545 = vpop.f32.mrb[0].mxu0
    %1546 = vdwg.mxu0
    %1548 = vrot.lane.b32.xlu0 %v1392, 8
    %v1549 = vpop.permute.xlu0 %1548
    %1552 = vrot.lane.b32.xlu0 %v1468, 16
    %v1553 = vpop.permute.xlu0 %1552
    %1556 = vrot.lane.b32.xlu0 %v1544, 24
    %v1557 = vpop.permute.xlu0 %1556
    %v1559 = vsel %vm230, %v1316, %v1549
    %v1560 = vsel %vm1239, %v1559, %v1553
    %v1561 = vsel %vm1241, %v1560, %v1557
    %v1562 = vld [vmem:[%s6] sm:$0xff]
    %v1563 = vld [vmem:[%s6 + $0x8] sm:$0xff]
    %v1564 = vld [vmem:[%s6 + $0x10] sm:$0xff]
    %v1565 = vld [vmem:[%s6 + $0x18] sm:$0xff]
    %v1566 = vld [vmem:[%s7] sm:$0x1]
    %v1568 = vlaneseq
    %v1569 = vshrl.u32 %v1568, 7
    %v1570 = vsub.s32 0, %v1569
    %v1571 = vrot.slane %v1566, %v1570
    %v1574 = vsel %vm66, %v1242, 0
    %v1577 = vsel %vm66, %v1561, 0
    %1579 = vmatprep.subr.mxu0 0.0
    %1580 = vmatpush1.msra.mxu0 %v1562
    %1581 = vmatprep.subr.mxu0 0.0
    %1582 = vmatpush1.msra.mxu0 %v1563
    %1583 = vmatprep.subr.mxu0 0.0
    %1584 = vmatpush1.msra.mxu0 %v1564
    %1585 = vmatprep.subr.mxu0 0.0
    %1586 = vmatpush1.msra.mxu0 %v1565
    %1587 = vmatprep.subr.mxu0 0.0
    %1588 = vmatpush1.msra.mxu0 0.0
    %1589 = vmatprep.subr.mxu0 0.0
    %1590 = vmatpush1.msra.mxu0 0.0
    %1591 = vmatprep.subr.mxu0 0.0
    %1592 = vmatpush1.msra.mxu0 0.0
    %1593 = vmatprep.subr.mxu0 0.0
    %1594 = vmatpush1.msra.mxu0 0.0
    %1595 = vmatprep.subr.mxu0 0.0
    %1596 = vmatpush1.msra.mxu0 0.0
    %1597 = vmatprep.subr.mxu0 0.0
    %1598 = vmatpush1.msra.mxu0 0.0
    %1599 = vmatprep.subr.mxu0 0.0
    %1600 = vmatpush1.msra.mxu0 0.0
    %1601 = vmatprep.subr.mxu0 0.0
    %1602 = vmatpush1.msra.mxu0 0.0
    %1603 = vmatprep.subr.mxu0 0.0
    %1604 = vmatpush1.msra.mxu0 0.0
    %1605 = vmatprep.subr.mxu0 0.0
    %1606 = vmatpush1.msra.mxu0 0.0
    %1607 = vmatprep.subr.mxu0 0.0
    %1608 = vmatpush1.msra.mxu0 0.0
    %1609 = vmatprep.subr.mxu0 0.0
    %1610 = vmatpush1.msra.mxu0 0.0
    %1611 = vmatprep.subr.mxu0 0.0
    %1612 = vmatpush1.msra.mxu0 0.0
    %1613 = vmatprep.subr.mxu0 0.0
    %1614 = vmatpush1.msra.mxu0 0.0
    %1615 = vmatprep.subr.mxu0 0.0
    %1616 = vmatpush1.msra.mxu0 0.0
    %1617 = vmatprep.subr.mxu0 0.0
    %1618 = vmatpush1.msra.mxu0 0.0
    %1619 = vmatprep.subr.mxu0 0.0
    %1620 = vmatpush1.msra.mxu0 0.0
    %1621 = vmatprep.subr.mxu0 0.0
    %1622 = vmatpush1.msra.mxu0 0.0
    %1623 = vmatprep.subr.mxu0 0.0
    %1624 = vmatpush1.msra.mxu0 0.0
    %1625 = vmatprep.subr.mxu0 0.0
    %1626 = vmatpush1.msra.mxu0 0.0
    %1627 = vmatprep.subr.mxu0 0.0
    %1628 = vmatpush1.msra.mxu0 0.0
    %1629 = vmatprep.subr.mxu0 0.0
    %1630 = vmatpush1.msra.mxu0 0.0
    %1631 = vmatprep.subr.mxu0 0.0
    %1632 = vmatpush1.msra.mxu0 0.0
    %1633 = vmatprep.subr.mxu0 0.0
    %1634 = vmatpush1.msra.mxu0 0.0
    %1635 = vmatprep.subr.mxu0 0.0
    %1636 = vmatpush1.msra.mxu0 0.0
    %1637 = vmatprep.subr.mxu0 0.0
    %1638 = vmatpush1.msra.mxu0 0.0
    %1639 = vmatprep.subr.mxu0 0.0
    %1640 = vmatpush1.msra.mxu0 0.0
    %1641 = vmatprep.subr.mxu0 0.0
    %1642 = vmatpush1.msra.mxu0 0.0
    %1643 = vmatprep.mubr.f32.mxu0 0.0
    %1644 = vmatmul.mubr.f32.gmra.mrb[0].mxu0 %v1574
    %v1645 = vpop.f32.mrb[0].mxu0
    %v1646 = vadd.f32 %v1571, %v1645
    %v1647 = vpop.f32.mrb[0].mxu0
    %1648 = vmatprep.mubr.f32.mxu0 0.0
    %1649 = vmatmul.mubr.f32.gmra.mrb[0].mxu0 %v1577
    %v1650 = vpop.f32.mrb[0].mxu0
    %v1651 = vadd.f32 %v1571, %v1650
    %v1652 = vpop.f32.mrb[0].mxu0
    %1653 = vdwg.mxu0
    %v1654 = vadd.f32 %v62, %v1646
    %v1655 = vadd.f32 %v63, %v1651
    %v1656 = vld [vmem:[%s8] sm:$0x1]
    %v1657 = vld [vmem:[%s9] sm:$0x1]
    %v1658 = vsel %vm66, %v1654, 0.0
    %1659 = vadd.xlane.f32.xlu0 %v1658
    %v1660 = vpop.xlane.xlu0 %1659
    %v1661 = vsel %vm66, %v1655, 0.0
    %1662 = vadd.xlane.f32.xlu0 %v1661
    %v1663 = vpop.xlane.xlu0 %1662
    %v1664 = vmul.f32 %v1660, %v73
    %v1665 = vmul.f32 %v1663, %v73
    %v1666 = vsub.f32 %v1654, %v1664
    %v1667 = vsub.f32 %v1655, %v1665
    %v1668 = vmul.f32 %v1666, %v1666
    %v1669 = vmul.f32 %v1667, %v1667
    %v1670 = vsel %vm66, %v1668, 0.0
    %1671 = vadd.xlane.f32.xlu0 %v1670
    %v1672 = vpop.xlane.xlu0 %1671
    %v1673 = vsel %vm66, %v1669, 0.0
    %1674 = vadd.xlane.f32.xlu0 %v1673
    %v1675 = vpop.xlane.xlu0 %1674
    %v1676 = vmul.f32 %v1672, 0.032258064
    %v1677 = vmul.f32 %v1675, 0.032258064
    %v1678 = vrsqrt.pop %v1676
    %v1679 = vmul.f32 %v1676, %v1678
    %vm1680 = vcmp.eq.f32.partialorder %v1676, inf
    %v1681 = vsel %vm1680, %v1676, %v1679
    %vm1682 = vcmp.eq.f32.partialorder %v1676, 0.0
    %v1683 = vand.u32 %v1676, 2147483648
    %v1684 = vsel %vm1682, %v1683, %v1681
    %v1685 = vrsqrt.pop %v1677
    %v1686 = vmul.f32 %v1677, %v1685
    %vm1687 = vcmp.eq.f32.partialorder %v1677, inf
    %v1688 = vsel %vm1687, %v1677, %v1686
    %vm1689 = vcmp.eq.f32.partialorder %v1677, 0.0
    %v1690 = vand.u32 %v1677, 2147483648
    %v1691 = vsel %vm1689, %v1690, %v1688
    %v1692 = vadd.f32 %v1684, 1e-06
    %v1693 = vadd.f32 %v1691, 1e-06
    %v1694 = vrcp.pop %v1692
    %v1695 = vrcp.pop %v1693
    %v1696 = vmul.f32 %v1666, %v1694
    %v1697 = vmul.f32 %v1667, %v1695
    %v1699 = vlaneseq
    %v1700 = vshrl.u32 %v1699, 7
    %v1701 = vsub.s32 0, %v1700
    %v1702 = vrot.slane %v1656, %v1701
    %v1704 = vmul.f32 %v1702, %v1696
    %v1705 = vmul.f32 %v1702, %v1697
    %v1707 = vlaneseq
    %v1708 = vshrl.u32 %v1707, 7
    %v1709 = vsub.s32 0, %v1708
    %v1710 = vrot.slane %v1657, %v1709
    %v1712 = vadd.f32 %v1704, %v1710
    %v1713 = vadd.f32 %v1705, %v1710
    %v1714 = vld [vmem:[%s10] sm:$0xff]
    %v1715 = vld [vmem:[%s10 + $0x8] sm:$0xff]
    %v1716 = vld [vmem:[%s10 + $0x10] sm:$0xff]
    %v1717 = vld [vmem:[%s10 + $0x18] sm:$0xff]
    %v1718 = vld [vmem:[%s11] sm:$0x1]
    %v1720 = vlaneseq
    %v1721 = vshrl.u32 %v1720, 7
    %v1722 = vsub.s32 0, %v1721
    %v1723 = vrot.slane %v1718, %v1722
    %v1726 = vsel %vm66, %v1712, 0
    %v1729 = vsel %vm66, %v1713, 0
    %1731 = vmatprep.subr.mxu0 0.0
    %1732 = vmatpush1.msra.mxu0 %v1714
    %1733 = vmatprep.subr.mxu0 0.0
    %1734 = vmatpush1.msra.mxu0 %v1715
    %1735 = vmatprep.subr.mxu0 0.0
    %1736 = vmatpush1.msra.mxu0 %v1716
    %1737 = vmatprep.subr.mxu0 0.0
    %1738 = vmatpush1.msra.mxu0 %v1717
    %1739 = vmatprep.subr.mxu0 0.0
    %1740 = vmatpush1.msra.mxu0 0.0
    %1741 = vmatprep.subr.mxu0 0.0
    %1742 = vmatpush1.msra.mxu0 0.0
    %1743 = vmatprep.subr.mxu0 0.0
    %1744 = vmatpush1.msra.mxu0 0.0
    %1745 = vmatprep.subr.mxu0 0.0
    %1746 = vmatpush1.msra.mxu0 0.0
    %1747 = vmatprep.subr.mxu0 0.0
    %1748 = vmatpush1.msra.mxu0 0.0
    %1749 = vmatprep.subr.mxu0 0.0
    %1750 = vmatpush1.msra.mxu0 0.0
    %1751 = vmatprep.subr.mxu0 0.0
    %1752 = vmatpush1.msra.mxu0 0.0
    %1753 = vmatprep.subr.mxu0 0.0
    %1754 = vmatpush1.msra.mxu0 0.0
    %1755 = vmatprep.subr.mxu0 0.0
    %1756 = vmatpush1.msra.mxu0 0.0
    %1757 = vmatprep.subr.mxu0 0.0
    %1758 = vmatpush1.msra.mxu0 0.0
    %1759 = vmatprep.subr.mxu0 0.0
    %1760 = vmatpush1.msra.mxu0 0.0
    %1761 = vmatprep.subr.mxu0 0.0
    %1762 = vmatpush1.msra.mxu0 0.0
    %1763 = vmatprep.subr.mxu0 0.0
    %1764 = vmatpush1.msra.mxu0 0.0
    %1765 = vmatprep.subr.mxu0 0.0
    %1766 = vmatpush1.msra.mxu0 0.0
    %1767 = vmatprep.subr.mxu0 0.0
    %1768 = vmatpush1.msra.mxu0 0.0
    %1769 = vmatprep.subr.mxu0 0.0
    %1770 = vmatpush1.msra.mxu0 0.0
    %1771 = vmatprep.subr.mxu0 0.0
    %1772 = vmatpush1.msra.mxu0 0.0
    %1773 = vmatprep.subr.mxu0 0.0
    %1774 = vmatpush1.msra.mxu0 0.0
    %1775 = vmatprep.subr.mxu0 0.0
    %1776 = vmatpush1.msra.mxu0 0.0
    %1777 = vmatprep.subr.mxu0 0.0
    %1778 = vmatpush1.msra.mxu0 0.0
    %1779 = vmatprep.subr.mxu0 0.0
    %1780 = vmatpush1.msra.mxu0 0.0
    %1781 = vmatprep.subr.mxu0 0.0
    %1782 = vmatpush1.msra.mxu0 0.0
    %1783 = vmatprep.subr.mxu0 0.0
    %1784 = vmatpush1.msra.mxu0 0.0
    %1785 = vmatprep.subr.mxu0 0.0
    %1786 = vmatpush1.msra.mxu0 0.0
    %1787 = vmatprep.subr.mxu0 0.0
    %1788 = vmatpush1.msra.mxu0 0.0
    %1789 = vmatprep.subr.mxu0 0.0
    %1790 = vmatpush1.msra.mxu0 0.0
    %1791 = vmatprep.subr.mxu0 0.0
    %1792 = vmatpush1.msra.mxu0 0.0
    %1793 = vmatprep.subr.mxu0 0.0
    %1794 = vmatpush1.msra.mxu0 0.0
    %1795 = vmatprep.mubr.f32.mxu0 0.0
    %1796 = vmatmul.mubr.f32.gmra.mrb[0].mxu0 %v1726
    %v1797 = vpop.f32.mrb[0].mxu0
    %v1798 = vadd.f32 %v1723, %v1797
    %v1799 = vpop.f32.mrb[0].mxu0
    %1800 = vmatprep.mubr.f32.mxu0 0.0
    %1801 = vmatmul.mubr.f32.gmra.mrb[0].mxu0 %v1729
    %v1802 = vpop.f32.mrb[0].mxu0
    %v1803 = vadd.f32 %v1723, %v1802
    %v1804 = vpop.f32.mrb[0].mxu0
    %1805 = vdwg.mxu0
    %v1806 = vmax.f32 %v1798, 0.0
    %v1807 = vmax.f32 %v1803, 0.0
    %v1808 = vld [vmem:[%s12] sm:$0xff]
    %v1809 = vld [vmem:[%s12 + $0x8] sm:$0xff]
    %v1810 = vld [vmem:[%s12 + $0x10] sm:$0xff]
    %v1811 = vld [vmem:[%s12 + $0x18] sm:$0xff]
    %v1812 = vld [vmem:[%s12 + $0x20] sm:$0xff]
    %v1813 = vld [vmem:[%s12 + $0x28] sm:$0xff]
    %v1814 = vld [vmem:[%s12 + $0x30] sm:$0xff]
    %v1815 = vld [vmem:[%s12 + $0x38] sm:$0xff]
    %v1816 = vld [vmem:[%s13] sm:$0x1]
    %v1818 = vlaneseq
    %v1819 = vshrl.u32 %v1818, 7
    %v1820 = vsub.s32 0, %v1819
    %v1821 = vrot.slane %v1816, %v1820
    %vm1823 = vcmask 523264
    %v1825 = vsel %vm1823, %v1806, 0
    %v1828 = vsel %vm1823, %v1807, 0
    %1830 = vmatprep.subr.mxu0 0.0
    %1831 = vmatpush1.msra.mxu0 %v1808
    %1832 = vmatprep.subr.mxu0 0.0
    %1833 = vmatpush1.msra.mxu0 %v1809
    %1834 = vmatprep.subr.mxu0 0.0
    %1835 = vmatpush1.msra.mxu0 %v1810
    %1836 = vmatprep.subr.mxu0 0.0
    %1837 = vmatpush1.msra.mxu0 %v1811
    %1838 = vmatprep.subr.mxu0 0.0
    %1839 = vmatpush1.msra.mxu0 %v1812
    %1840 = vmatprep.subr.mxu0 0.0
    %1841 = vmatpush1.msra.mxu0 %v1813
    %1842 = vmatprep.subr.mxu0 0.0
    %1843 = vmatpush1.msra.mxu0 %v1814
    %1844 = vmatprep.subr.mxu0 0.0
    %1845 = vmatpush1.msra.mxu0 %v1815
    %1846 = vmatprep.subr.mxu0 0.0
    %1847 = vmatpush1.msra.mxu0 0.0
    %1848 = vmatprep.subr.mxu0 0.0
    %1849 = vmatpush1.msra.mxu0 0.0
    %1850 = vmatprep.subr.mxu0 0.0
    %1851 = vmatpush1.msra.mxu0 0.0
    %1852 = vmatprep.subr.mxu0 0.0
    %1853 = vmatpush1.msra.mxu0 0.0
    %1854 = vmatprep.subr.mxu0 0.0
    %1855 = vmatpush1.msra.mxu0 0.0
    %1856 = vmatprep.subr.mxu0 0.0
    %1857 = vmatpush1.msra.mxu0 0.0
    %1858 = vmatprep.subr.mxu0 0.0
    %1859 = vmatpush1.msra.mxu0 0.0
    %1860 = vmatprep.subr.mxu0 0.0
    %1861 = vmatpush1.msra.mxu0 0.0
    %1862 = vmatprep.subr.mxu0 0.0
    %1863 = vmatpush1.msra.mxu0 0.0
    %1864 = vmatprep.subr.mxu0 0.0
    %1865 = vmatpush1.msra.mxu0 0.0
    %1866 = vmatprep.subr.mxu0 0.0
    %1867 = vmatpush1.msra.mxu0 0.0
    %1868 = vmatprep.subr.mxu0 0.0
    %1869 = vmatpush1.msra.mxu0 0.0
    %1870 = vmatprep.subr.mxu0 0.0
    %1871 = vmatpush1.msra.mxu0 0.0
    %1872 = vmatprep.subr.mxu0 0.0
    %1873 = vmatpush1.msra.mxu0 0.0
    %1874 = vmatprep.subr.mxu0 0.0
    %1875 = vmatpush1.msra.mxu0 0.0
    %1876 = vmatprep.subr.mxu0 0.0
    %1877 = vmatpush1.msra.mxu0 0.0
    %1878 = vmatprep.subr.mxu0 0.0
    %1879 = vmatpush1.msra.mxu0 0.0
    %1880 = vmatprep.subr.mxu0 0.0
    %1881 = vmatpush1.msra.mxu0 0.0
    %1882 = vmatprep.subr.mxu0 0.0
    %1883 = vmatpush1.msra.mxu0 0.0
    %1884 = vmatprep.subr.mxu0 0.0
    %1885 = vmatpush1.msra.mxu0 0.0
    %1886 = vmatprep.subr.mxu0 0.0
    %1887 = vmatpush1.msra.mxu0 0.0
    %1888 = vmatprep.subr.mxu0 0.0
    %1889 = vmatpush1.msra.mxu0 0.0
    %1890 = vmatprep.subr.mxu0 0.0
    %1891 = vmatpush1.msra.mxu0 0.0
    %1892 = vmatprep.subr.mxu0 0.0
    %1893 = vmatpush1.msra.mxu0 0.0
    %1894 = vmatprep.mubr.f32.mxu0 0.0
    %1895 = vmatmul.mubr.f32.gmra.mrb[0].mxu0 %v1825
    %v1896 = vpop.f32.mrb[0].mxu0
    %v1897 = vadd.f32 %v1821, %v1896
    %v1898 = vpop.f32.mrb[0].mxu0
    %1899 = vmatprep.mubr.f32.mxu0 0.0
    %1900 = vmatmul.mubr.f32.gmra.mrb[0].mxu0 %v1828
    %v1901 = vpop.f32.mrb[0].mxu0
    %v1902 = vadd.f32 %v1821, %v1901
    %v1903 = vpop.f32.mrb[0].mxu0
    %1904 = vdwg.mxu0
    %v1905 = vadd.f32 %v1654, %v1897
    %v1906 = vadd.f32 %v1655, %v1902
    %1907 = vst.msk [vmem:[#allocation5] sm:$0xff] %vm66, %v1905
    %1908 = vst.msk [vmem:[#allocation5 + $0x8] sm:$0xff] %vm66, %v1906
    // Predicated region
    $region62: #{tpu_custom_call.1} parent=1 // pred_check
      _
    $region63: #{tpu_custom_call.1} parent=1 // pred_check_branch
      %1910 = sbr.rel (0) target = $region65
    $region64: #{tpu_custom_call.1} parent=1 // pred_region
      %s1912 = ssub.s32 256, 256
      %1913 = vsyncadd [#allocation4], %s1912
      %s1914 = sshll.u32 [#allocation5], 4
      %s1915 = int_to_ptr.vmem [resolvable:$true] %s1914
      %1920 = dma.vmem_to_hbm [thread:$0]  %s1915, 256, %s14, [#allocation4], 128, 128, 8
    $region65: #{tpu_custom_call.1} parent=1 // pred_fallthru
      _
    // Predicated region
    $region66: #{tpu_custom_call.1} parent=1 // pred_check
      _
    $region67: #{tpu_custom_call.1} parent=1 // pred_check_branch
      %1922 = sbr.rel (0) target = $region69
    $region68: #{tpu_custom_call.1} parent=1 // pred_region
      %1923 = dma.done [#allocation4], 256
    $region69: #{tpu_custom_call.1} parent=1 // pred_fallthru
      _
    %1924 = vsyncpa [#allocation3], 1
    %1925 = vsyncpa [#allocation4], 1

</llo_original>
